<compile_context>
chip_gen: v7x
topology: tpu7x:2x2x1
jax: 0.10.0
libtpu: 0.0.40
codegen_flags: <defaults>
</compile_context>

<pallas_src>
import numpy as np
import jax
import jax.numpy as jnp
from jax import lax
from jax.experimental import pallas as pl
from jax.experimental.pallas import tpu as pltpu

_EPS = 1e-5            # matches HSNet/QCLNet correlation epsilon (norm + 1e-5)
_TILE_TARGET = 512     # production HW tile width (lane-dense multiple of 128)
_FOLD_B_BYTES = 4 << 20  # fold whole batch into one block below this budget


# ----------------------------------------------------------------------------
# Bilinear interpolation with align_corners=True (matches F.interpolate)
# ----------------------------------------------------------------------------
def _interp_matrix(n_out, n_in):
    if n_out == 1:
        src = np.zeros((1,), dtype=np.float64)
    else:
        src = np.arange(n_out, dtype=np.float64) * (n_in - 1) / (n_out - 1)
    lo = np.floor(src).astype(np.int64)
    hi = np.minimum(lo + 1, n_in - 1)
    frac = src - lo
    w = np.zeros((n_out, n_in), dtype=np.float32)
    w[np.arange(n_out), lo] += (1.0 - frac).astype(np.float32)
    w[np.arange(n_out), hi] += frac.astype(np.float32)
    return jnp.asarray(w)


def bilinear_align_corners(x, out_hw):
    """x: (B, C, H, W) -> (B, C, Ho, Wo), align_corners=True."""
    ho, wo = out_hw
    _, _, h, w = x.shape
    wh = _interp_matrix(ho, h)
    ww = _interp_matrix(wo, w)
    return jnp.einsum('oh,bchw,pw->bcop', wh, x, ww)


# ----------------------------------------------------------------------------
# Pallas kernels: grouped masked cosine correlation
#   q block: (bB, C, tq) bf16   s block: (bB, C, ts) bf16   m block: (bB, 1, ts)
#   out = relu( normalize(q)^T @ normalize(s * m) )   (eps = 1e-5)
# Layer-4 variant additionally emits sigmoid(rowmax(corr)) of the *last*
# layer-4 pair for the corr_matrix branch.
# ----------------------------------------------------------------------------
_DOT_DN = (((0,), (0,)), ((), ()))      # contract channels: (C,tq)^T @ (C,ts)


def _normalize_q(q_ref, qn_ref):
    # f32 normalization math; reciprocal on the EUP slot; bf16 MXU operand out.
    q = q_ref[...].astype(jnp.float32)
    inv = pl.reciprocal(
        jnp.sqrt(jnp.sum(q * q, axis=1, keepdims=True)) + _EPS, approx=True)
    qn_ref[...] = (q * inv).astype(jnp.bfloat16)


def _normalized_masked_s(s_ref, m_ref):
    s = s_ref[...].astype(jnp.float32) * m_ref[...]
    inv = pl.reciprocal(
        jnp.sqrt(jnp.sum(s * s, axis=1, keepdims=True)) + _EPS, approx=True)
    return (s * inv).astype(jnp.bfloat16)


def _corr_group_kernel(q_ref, s_ref, m_ref, o_ref, qn_ref):
    # The q tile is resident across the js axis: normalize it once per (l, iq).
    @pl.when(pl.program_id(3) == 0)
    def _():
        _normalize_q(q_ref, qn_ref)

    sn = _normalized_masked_s(s_ref, m_ref)
    for b in range(o_ref.shape[0]):               # static unroll of folded batch
        c = lax.dot_general(qn_ref[b], sn[b], _DOT_DN,
                            preferred_element_type=jnp.float32)
        o_ref[b] = jnp.maximum(c, 0.0).astype(o_ref.dtype)


def _corr_group_l4_kernel(q_ref, s_ref, m_ref, o_ref, cm_ref, qn_ref, mx_ref):
    js = pl.program_id(3)
    last_l = pl.program_id(1) == pl.num_programs(1) - 1
    last_js = js == pl.num_programs(3) - 1

    @pl.when(js == 0)
    def _():
        _normalize_q(q_ref, qn_ref)
        mx_ref[...] = jnp.zeros_like(mx_ref)      # corr >= 0 after relu

    sn = _normalized_masked_s(s_ref, m_ref)
    for b in range(o_ref.shape[0]):
        c = lax.dot_general(qn_ref[b], sn[b], _DOT_DN,
                            preferred_element_type=jnp.float32)
        c = jnp.maximum(c, 0.0)
        o_ref[b] = c.astype(o_ref.dtype)

        # corr_matrix epilogue: only the deepest (last) layer-4 pair feeds it.
        @pl.when(last_l)
        def _():
            mx_ref[b] = jnp.maximum(mx_ref[b],
                                    jnp.max(c, axis=1, keepdims=True))

    @pl.when(jnp.logical_and(last_l, last_js))
    def _():
        cm_ref[...] = 1.0 / (1.0 + jnp.exp(-mx_ref[...]))


def _tile(hw):
    """Full-extent block at toy sizes, lane-dense 512-wide tiles when possible."""
    if hw <= _TILE_TARGET or hw % _TILE_TARGET != 0:
        return hw
    return _TILE_TARGET


def group_cosine_correlation(q_list, s_list, support_mask,
                             with_corr_matrix=False,
                             corr_dtype=jnp.bfloat16):
    """All layers of one resolution group in a single pallas_call.

    q_list/s_list: lists of (B, C, H, W) features with identical shapes.
    Returns corr6d (B, L, Hq, Wq, Hs, Ws) [and cm (B, HWq, 1) for layer-4]."""
    L = len(q_list)
    B, C, Hq, Wq = q_list[0].shape
    _, _, Hs, Ws = s_list[0].shape
    HWq, HWs = Hq * Wq, Hs * Ws

    # native (L, B, C, HW) layout, bf16 I/O (halves input DMA traffic).
    # TODO(synk): produce features directly stacked to avoid this HBM copy.
    q_g = jnp.stack([f.reshape(B, C, HWq) for f in q_list]).astype(jnp.bfloat16)
    s_g = jnp.stack([f.reshape(B, C, HWs) for f in s_list]).astype(jnp.bfloat16)

    # mask_feature: resize support mask to the feature resolution (lane-dense row)
    mask = bilinear_align_corners(
        support_mask[:, None].astype(jnp.float32), (Hs, Ws))        # (B,1,Hs,Ws)
    m = mask.reshape(B, 1, HWs)

    tq, ts = _tile(HWq), _tile(HWs)
    nq, ns = HWq // tq, HWs // ts
    out_isz = np.dtype(corr_dtype).itemsize

    # fold the whole batch into one block when it comfortably fits VMEM
    per_b_bytes = (2 * C * (tq + ts) + 4 * ts + tq * ts * out_isz
                   + 2 * C * tq + 8 * tq)
    bB = B if B * per_b_bytes <= _FOLD_B_BYTES else 1
    nb = B // bB

    grid = (nb, L, nq, ns)
    in_specs = [
        # q tile resident across js (index_map independent of js)
        pl.BlockSpec((None, bB, C, tq), lambda bi, l, iq, js: (l, bi, 0, iq)),
        pl.BlockSpec((None, bB, C, ts), lambda bi, l, iq, js: (l, bi, 0, js)),
        # mask block depends only on (b, js): never re-DMA'd across layers
        pl.BlockSpec((bB, 1, ts),       lambda bi, l, iq, js: (bi, 0, js)),
    ]
    # corr emitted directly in (B, L, HWq, HWs) layout -> no wrapper transpose.
    out_shape = jax.ShapeDtypeStruct((B, L, HWq, HWs), corr_dtype)
    out_specs = pl.BlockSpec((bB, None, tq, ts),
                             lambda bi, l, iq, js: (bi, l, iq, js))
    scratch = [pltpu.VMEM((bB, C, tq), jnp.bfloat16)]        # resident qn tile
    semantics = ("parallel", "parallel", "arbitrary", "arbitrary")
    kernel = _corr_group_kernel

    if with_corr_matrix:
        out_shape = (out_shape, jax.ShapeDtypeStruct((B, HWq, 1), jnp.float32))
        out_specs = (out_specs,
                     pl.BlockSpec((bB, tq, 1), lambda bi, l, iq, js: (bi, iq, 0)))
        scratch = scratch + [pltpu.VMEM((bB, tq, 1), jnp.float32)]  # running max
        # corr_matrix is resident across l (written only at l == L-1), so the
        # layer axis must be sequential for this group.
        semantics = ("parallel", "arbitrary", "arbitrary", "arbitrary")
        kernel = _corr_group_l4_kernel

    # explicit scoped-VMEM budget (double-buffered blocks + scratch, headroom);
    # TODO(synk): retune per generation together with tq/ts (v7x has 64 MiB).
    block_bytes = (bB * C * tq * 2 + bB * C * ts * 2 + bB * ts * 4
                   + bB * tq * ts * out_isz)
    scratch_bytes = bB * C * tq * 2
    if with_corr_matrix:
        block_bytes += bB * tq * 4
        scratch_bytes += bB * tq * 4
    vmem_limit = int(min(max(2 * (2 * block_bytes + scratch_bytes), 32 << 20),
                         64 << 20))

    result = pl.pallas_call(
        kernel,
        out_shape=out_shape,
        grid_spec=pltpu.PrefetchScalarGridSpec(
            num_scalar_prefetch=0,
            grid=grid,
            in_specs=in_specs,
            out_specs=out_specs,
            scratch_shapes=scratch),
        compiler_params=pltpu.CompilerParams(
            dimension_semantics=semantics,
            vmem_limit_bytes=vmem_limit),
    )(q_g, s_g, m)

    if with_corr_matrix:
        corr_flat, cm = result
    else:
        corr_flat, cm = result, None

    # contiguous reshape only (no transpose): (B,L,HWq,HWs) -> (B,L,Hq,Wq,Hs,Ws)
    corr6d = corr_flat.reshape(B, L, Hq, Wq, Hs, Ws)
    if with_corr_matrix:
        return corr6d, cm
    return corr6d


# ----------------------------------------------------------------------------
# Pure-JAX f32 reference (for tolerance checks; see __main__)
# ----------------------------------------------------------------------------
def _ref_group_correlation(q_list, s_list, support_mask):
    B, C, Hq, Wq = q_list[0].shape
    _, _, Hs, Ws = s_list[0].shape
    mask = bilinear_align_corners(
        support_mask[:, None].astype(jnp.float32), (Hs, Ws))
    corrs = []
    for q, s in zip(q_list, s_list):
        sm = (s * mask).reshape(B, C, Hs * Ws)
        qv = q.reshape(B, C, Hq * Wq)
        qn = qv / (jnp.sqrt(jnp.sum(qv * qv, axis=1, keepdims=True)) + _EPS)
        sn = sm / (jnp.sqrt(jnp.sum(sm * sm, axis=1, keepdims=True)) + _EPS)
        corrs.append(jnp.maximum(jnp.einsum('bcq,bcs->bqs', qn, sn), 0.0))
    return jnp.stack(corrs, axis=1).reshape(B, len(q_list), Hq, Wq, Hs, Ws)


# ----------------------------------------------------------------------------
# Deterministic stand-in backbone pyramid (ResNet-50 list structure).
# nbottlenecks = [3, 4, 6, 3]  ->  14 kept features:
#   1 x layer1, 4 x layer2, 6 x layer3, 3 x layer4      stack_ids = [3, 9, 13]
# ----------------------------------------------------------------------------
FEAT_SPECS = (
    [(64, 16, 16)] * 1 +      # layer1  (C, Hf, Wf)
    [(128, 16, 16)] * 4 +     # layer2
    [(256, 8, 8)] * 6 +       # layer3
    [(512, 8, 8)] * 3         # layer4
)
STACK_IDS = (3, 9, 13)


def make_backbone_params(key):
    params = []
    for i, (c, _, _) in enumerate(FEAT_SPECS):
        kw, kb = jax.random.split(jax.random.fold_in(key, i))
        w = jax.random.normal(kw, (3, c), dtype=jnp.float32) * 0.5
        b = jax.random.normal(kb, (c,), dtype=jnp.float32) * 0.1
        params.append((w, b))
    return params


def _avg_pool_to(x, hw):
    B, C, H, W = x.shape
    ho, wo = hw
    fh, fw = H // ho, W // wo
    return x.reshape(B, C, ho, fh, wo, fw).mean(axis=(3, 5))


def extract_feats_standin(img, params):
    # TODO(synk): stand-in for extract_feat_res with a pretrained ResNet-50.
    feats = []
    for (c, hf, wf), (w, b) in zip(FEAT_SPECS, params):
        pooled = _avg_pool_to(img, (hf, wf))                        # (B,3,hf,wf)
        f = jnp.einsum('bchw,cd->bdhw', pooled, w) + b[None, :, None, None]
        feats.append(jax.nn.relu(f))
    return feats


# ----------------------------------------------------------------------------
# QCLNet.forward (correlation + corr_matrix branch)
# ----------------------------------------------------------------------------
def qclnet_forward(query_img, support_img, support_mask, params):
    query_feats = extract_feats_standin(query_img, params)
    support_feats = extract_feats_standin(support_img, params)

    # multilayer_correlation over the last stack_ids[-1] = 13 layer pairs,
    # with support-feature masking fused into the kernels.
    n_sel = STACK_IDS[-1]
    q_sel = query_feats[-n_sel:]
    s_sel = support_feats[-n_sel:]

    n4 = STACK_IDS[0]                    # 3 layer-4 pairs
    n3 = STACK_IDS[1] - STACK_IDS[0]     # 6 layer-3 pairs
    n2 = STACK_IDS[2] - STACK_IDS[1]     # 4 layer-2 pairs

    q_l2, s_l2 = q_sel[:n2], s_sel[:n2]
    q_l3, s_l3 = q_sel[n2:n2 + n3], s_sel[n2:n2 + n3]
    q_l4, s_l4 = q_sel[n2 + n3:], s_sel[n2 + n3:]
    assert len(q_l4) == n4

    corr_l2 = group_cosine_correlation(q_l2, s_l2, support_mask)     # (B,4,...)
    corr_l3 = group_cosine_correlation(q_l3, s_l3, support_mask)     # (B,6,...)
    corr_l4, cm_flat = group_cosine_correlation(
        q_l4, s_l4, support_mask, with_corr_matrix=True)             # (B,3,...)

    corr = [corr_l4, corr_l3, corr_l2]

    # corr_matrix = sigmoid(max over (hb*wb)) of the LAST (deepest) layer-4
    # correlation, upsampled to the support image size (align_corners=True).
    # The max+sigmoid is fused into the layer-4 kernel -> cm_flat (B, HWq, 1).
    B = query_img.shape[0]
    Hq4, Wq4 = q_l4[-1].shape[2], q_l4[-1].shape[3]
    cm = cm_flat.reshape(B, 1, Hq4, Wq4)
    cm = bilinear_align_corners(cm, support_img.shape[2:])
    corr_matrix = cm[:, 0]                                           # (B,Himg,Wimg)

    # TODO(synk): QCLLearner(corr, stack_feats(query_feats)) is an external,
    #             undefined module; logit_mask is not computed.
    logit_mask = None
    del corr
    return logit_mask, corr_matrix


# ----------------------------------------------------------------------------
if __name__ == "__main__":
    key = jax.random.PRNGKey(0)
    k_params, k_q, k_s, k_m = jax.random.split(key, 4)

    B, H_IMG, W_IMG = 2, 64, 64
    query_img = jax.random.normal(k_q, (B, 3, H_IMG, W_IMG), dtype=jnp.float32)
    support_img = jax.random.normal(k_s, (B, 3, H_IMG, W_IMG), dtype=jnp.float32)
    support_mask = (jax.random.uniform(k_m, (B, H_IMG, W_IMG)) > 0.5).astype(
        jnp.float32)

    params = make_backbone_params(k_params)

    logit_mask, corr_matrix = qclnet_forward(query_img, support_img,
                                             support_mask, params)
    corr_matrix = jax.block_until_ready(corr_matrix)

    assert corr_matrix.shape == (B, H_IMG, W_IMG)
    assert bool(jnp.all(jnp.isfinite(corr_matrix)))
    assert bool(jnp.all(corr_matrix >= 0.0)) and bool(jnp.all(corr_matrix <= 1.0))

    # --- pure-JAX f32 reference checks ---------------------------------------
    # Documented tolerance: bf16 feature I/O + bf16 MXU operands + approx
    # reciprocal put the correlation within ~1e-2 absolute of the f32 torch
    # reference (corr_matrix tighter after the sigmoid).
    qf = extract_feats_standin(query_img, params)
    sf = extract_feats_standin(support_img, params)
    n4 = STACK_IDS[0]
    q_l4, s_l4 = qf[-n4:], sf[-n4:]

    corr_l4, cm_flat = group_cosine_correlation(q_l4, s_l4, support_mask,
                                                with_corr_matrix=True)
    ref_l4 = _ref_group_correlation(q_l4, s_l4, support_mask)
    np.testing.assert_allclose(np.asarray(corr_l4.astype(jnp.float32)),
                               np.asarray(ref_l4), atol=4e-2, rtol=0)

    Hq4, Wq4 = q_l4[-1].shape[2], q_l4[-1].shape[3]
    ref_cm = jax.nn.sigmoid(
        jnp.max(ref_l4[:, -1].reshape(B, Hq4, Wq4, -1), axis=-1))
    ref_cm = bilinear_align_corners(ref_cm[:, None], (H_IMG, W_IMG))[:, 0]
    np.testing.assert_allclose(np.asarray(corr_matrix), np.asarray(ref_cm),
                               atol=2e-2, rtol=0)

    print("KERNEL_OK")
</pallas_src>

<mosaic_0001>
module attributes {stable_mosaic.version = 11 : i64} {
  func.func @_corr_group_kernel(%arg0: i32, %arg1: i32, %arg2: i32, %arg3: i32, %arg4: memref<1x2x128x256xbf16, #tpu.memory_space<vmem>>, %arg5: memref<1x2x128x256xbf16, #tpu.memory_space<vmem>>, %arg6: memref<2x1x256xf32, #tpu.memory_space<vmem>>, %arg7: memref<2x1x256x256xbf16, #tpu.memory_space<vmem>>, %arg8: memref<2x128x256xbf16, #tpu.memory_space<vmem>>) attributes {dimension_semantics = [#tpu.dimension_semantics<parallel>, #tpu.dimension_semantics<parallel>, #tpu.dimension_semantics<arbitrary>, #tpu.dimension_semantics<arbitrary>], iteration_bounds = array<i64: 1, 4, 1, 1>, scalar_prefetch = 0 : i64, scratch_operands = 1 : i64, tpu.core_type = #tpu.core_type<tc>, window_params = [{transform_indices = @transform_0, window_bounds = array<i64: 1, 2, 128, 256>}, {transform_indices = @transform_1, window_bounds = array<i64: 1, 2, 128, 256>}, {transform_indices = @transform_2, window_bounds = array<i64: 2, 1, 256>}, {transform_indices = @transform_3, window_bounds = array<i64: 2, 1, 256, 256>}]} {
    %c0_i32 = arith.constant 0 : i32
    %0 = arith.cmpi eq, %arg3, %c0_i32 : i32
    %1 = arith.extui %0 : i1 to i32
    %c0_i32_0 = arith.constant 0 : i32
    %2 = arith.cmpi ne, %1, %c0_i32_0 : i32
    scf.if %2 {
      %c0_25 = arith.constant 0 : index
      %c0_26 = arith.constant 0 : index
      %c0_27 = arith.constant 0 : index
      %c0_28 = arith.constant 0 : index
      %41 = vector.load %arg4[%c0_25, %c0_26, %c0_27, %c0_28] : memref<1x2x128x256xbf16, #tpu.memory_space<vmem>>, vector<1x2x128x256xbf16>
      %42 = vector.shape_cast %41 : vector<1x2x128x256xbf16> to vector<2x128x256xbf16>
      %43 = arith.extf %42 : vector<2x128x256xbf16> to vector<2x128x256xf32>
      %44 = arith.mulf %43, %43 : vector<2x128x256xf32>
      %cst_29 = arith.constant dense<0.000000e+00> : vector<2x256xf32>
      %45 = vector.multi_reduction <add>, %44, %cst_29 [1] : vector<2x128x256xf32> to vector<2x256xf32>
      %46 = vector.shape_cast %45 : vector<2x256xf32> to vector<2x1x256xf32>
      %47 = math.sqrt %46 : vector<2x1x256xf32>
      %cst_30 = arith.constant 9.99999974E-6 : f32
      %48 = vector.broadcast %cst_30 : f32 to vector<2x1x256xf32>
      %49 = arith.addf %47, %48 : vector<2x1x256xf32>
      %50 = tpu.reciprocal %49 {approx = true} : vector<2x1x256xf32> -> vector<2x1x256xf32>
      %51 = vector.broadcast %50 : vector<2x1x256xf32> to vector<2x128x256xf32>
      %52 = arith.mulf %43, %51 : vector<2x128x256xf32>
      %53 = arith.truncf %52 : vector<2x128x256xf32> to vector<2x128x256xbf16>
      %c0_31 = arith.constant 0 : index
      %c0_32 = arith.constant 0 : index
      %c0_33 = arith.constant 0 : index
      %54 = vector.load %arg8[%c0_31, %c0_32, %c0_33] : memref<2x128x256xbf16, #tpu.memory_space<vmem>>, vector<2x128x256xbf16>
      tpu.vector_store %arg8[%c0_31, %c0_32, %c0_33], %53 {strides = array<i32>} : memref<2x128x256xbf16, #tpu.memory_space<vmem>>, vector<2x128x256xbf16>,
    } else {
    }
    %c0 = arith.constant 0 : index
    %c0_1 = arith.constant 0 : index
    %c0_2 = arith.constant 0 : index
    %c0_3 = arith.constant 0 : index
    %3 = vector.load %arg5[%c0, %c0_1, %c0_2, %c0_3] : memref<1x2x128x256xbf16, #tpu.memory_space<vmem>>, vector<1x2x128x256xbf16>
    %4 = vector.shape_cast %3 : vector<1x2x128x256xbf16> to vector<2x128x256xbf16>
    %5 = arith.extf %4 : vector<2x128x256xbf16> to vector<2x128x256xf32>
    %c0_4 = arith.constant 0 : index
    %c0_5 = arith.constant 0 : index
    %c0_6 = arith.constant 0 : index
    %6 = vector.load %arg6[%c0_4, %c0_5, %c0_6] : memref<2x1x256xf32, #tpu.memory_space<vmem>>, vector<2x1x256xf32>
    %7 = vector.broadcast %6 : vector<2x1x256xf32> to vector<2x128x256xf32>
    %8 = arith.mulf %5, %7 : vector<2x128x256xf32>
    %9 = arith.mulf %8, %8 : vector<2x128x256xf32>
    %cst = arith.constant dense<0.000000e+00> : vector<2x256xf32>
    %10 = vector.multi_reduction <add>, %9, %cst [1] : vector<2x128x256xf32> to vector<2x256xf32>
    %11 = vector.shape_cast %10 : vector<2x256xf32> to vector<2x1x256xf32>
    %12 = math.sqrt %11 : vector<2x1x256xf32>
    %cst_7 = arith.constant 9.99999974E-6 : f32
    %13 = vector.broadcast %cst_7 : f32 to vector<2x1x256xf32>
    %14 = arith.addf %12, %13 : vector<2x1x256xf32>
    %15 = tpu.reciprocal %14 {approx = true} : vector<2x1x256xf32> -> vector<2x1x256xf32>
    %16 = vector.broadcast %15 : vector<2x1x256xf32> to vector<2x128x256xf32>
    %17 = arith.mulf %8, %16 : vector<2x128x256xf32>
    %18 = arith.truncf %17 : vector<2x128x256xf32> to vector<2x128x256xbf16>
    %c0_8 = arith.constant 0 : index
    %c0_9 = arith.constant 0 : index
    %c0_10 = arith.constant 0 : index
    %19 = vector.load %arg8[%c0_8, %c0_9, %c0_10] : memref<2x128x256xbf16, #tpu.memory_space<vmem>>, vector<1x128x256xbf16>
    %20 = vector.shape_cast %19 : vector<1x128x256xbf16> to vector<128x256xbf16>
    %21 = vector.extract_strided_slice %18 {offsets = [0, 0, 0], sizes = [1, 128, 256], strides = [1, 1, 1]} : vector<2x128x256xbf16> to vector<1x128x256xbf16>
    %22 = vector.shape_cast %21 : vector<1x128x256xbf16> to vector<128x256xbf16>
    %cst_11 = arith.constant dense<0.000000e+00> : vector<256x256xf32>
    %23 = tpu.matmul %20, %22, %cst_11 {dimension_numbers = #tpu.dot_dimension_numbers<[0], [0], [1], [1], [0, 1, 1, 1], [], []>} : vector<128x256xbf16>, vector<128x256xbf16>, vector<256x256xf32> -> vector<256x256xf32>
    %cst_12 = arith.constant 0.000000e+00 : f32
    %24 = vector.broadcast %cst_12 : f32 to vector<256x256xf32>
    %25 = arith.maximumf %23, %24 : vector<256x256xf32>
    %26 = arith.truncf %25 : vector<256x256xf32> to vector<256x256xbf16>
    %c0_13 = arith.constant 0 : index
    %c0_14 = arith.constant 0 : index
    %c0_15 = arith.constant 0 : index
    %c0_16 = arith.constant 0 : index
    %27 = vector.load %arg7[%c0_13, %c0_14, %c0_15, %c0_16] : memref<2x1x256x256xbf16, #tpu.memory_space<vmem>>, vector<1x1x256x256xbf16>
    %28 = vector.shape_cast %27 : vector<1x1x256x256xbf16> to vector<256x256xbf16>
    %29 = vector.shape_cast %26 : vector<256x256xbf16> to vector<1x1x256x256xbf16>
    tpu.vector_store %arg7[%c0_13, %c0_14, %c0_15, %c0_16], %29 {strides = array<i32>} : memref<2x1x256x256xbf16, #tpu.memory_space<vmem>>, vector<1x1x256x256xbf16>,
    %c1 = arith.constant 1 : index
    %c0_17 = arith.constant 0 : index
    %c0_18 = arith.constant 0 : index
    %30 = vector.load %arg8[%c1, %c0_17, %c0_18] : memref<2x128x256xbf16, #tpu.memory_space<vmem>>, vector<1x128x256xbf16>
    %31 = vector.shape_cast %30 : vector<1x128x256xbf16> to vector<128x256xbf16>
    %32 = vector.extract_strided_slice %18 {offsets = [1, 0, 0], sizes = [1, 128, 256], strides = [1, 1, 1]} : vector<2x128x256xbf16> to vector<1x128x256xbf16>
    %33 = vector.shape_cast %32 : vector<1x128x256xbf16> to vector<128x256xbf16>
    %cst_19 = arith.constant dense<0.000000e+00> : vector<256x256xf32>
    %34 = tpu.matmul %31, %33, %cst_19 {dimension_numbers = #tpu.dot_dimension_numbers<[0], [0], [1], [1], [0, 1, 1, 1], [], []>} : vector<128x256xbf16>, vector<128x256xbf16>, vector<256x256xf32> -> vector<256x256xf32>
    %cst_20 = arith.constant 0.000000e+00 : f32
    %35 = vector.broadcast %cst_20 : f32 to vector<256x256xf32>
    %36 = arith.maximumf %34, %35 : vector<256x256xf32>
    %37 = arith.truncf %36 : vector<256x256xf32> to vector<256x256xbf16>
    %c1_21 = arith.constant 1 : index
    %c0_22 = arith.constant 0 : index
    %c0_23 = arith.constant 0 : index
    %c0_24 = arith.constant 0 : index
    %38 = vector.load %arg7[%c1_21, %c0_22, %c0_23, %c0_24] : memref<2x1x256x256xbf16, #tpu.memory_space<vmem>>, vector<1x1x256x256xbf16>
    %39 = vector.shape_cast %38 : vector<1x1x256x256xbf16> to vector<256x256xbf16>
    %40 = vector.shape_cast %37 : vector<256x256xbf16> to vector<1x1x256x256xbf16>
    tpu.vector_store %arg7[%c1_21, %c0_22, %c0_23, %c0_24], %40 {strides = array<i32>} : memref<2x1x256x256xbf16, #tpu.memory_space<vmem>>, vector<1x1x256x256xbf16>,
    return
  }
  func.func @transform_0(%arg0: i32, %arg1: i32, %arg2: i32, %arg3: i32) -> (i32, i32, i32, i32) {
    %c0_i32 = arith.constant 0 : i32
    %c0_i32_0 = arith.constant 0 : i32
    return %arg1, %arg0, %c0_i32, %arg2 : i32, i32, i32, i32
  }
  func.func @transform_1(%arg0: i32, %arg1: i32, %arg2: i32, %arg3: i32) -> (i32, i32, i32, i32) {
    %c0_i32 = arith.constant 0 : i32
    %c0_i32_0 = arith.constant 0 : i32
    return %arg1, %arg0, %c0_i32, %arg3 : i32, i32, i32, i32
  }
  func.func @transform_2(%arg0: i32, %arg1: i32, %arg2: i32, %arg3: i32) -> (i32, i32, i32) {
    %c0_i32 = arith.constant 0 : i32
    %c0_i32_0 = arith.constant 0 : i32
    return %arg0, %c0_i32, %arg3 : i32, i32, i32
  }
  func.func @transform_3(%arg0: i32, %arg1: i32, %arg2: i32, %arg3: i32) -> (i32, i32, i32, i32) {
    %c0_i32 = arith.constant 0 : i32
    return %arg0, %arg1, %arg2, %arg3 : i32, i32, i32, i32
  }
}

</mosaic_0001>

<llo_original>
// kernel: tpu_custom_call.1
$region0: #{tpu_custom_call.1}
  #allocation0 [shape = 'u32[]', space=smem, size = 0x4, offset = 0x4, fixed_abs, tag = 'smem constant byte address 0x4 - core index']
  #allocation1 [shape = 'u32[144,128]{1,0:T(1,128)}', space=vmem, size = 0x12000, scoped, tag = 'internal scratch']
  #allocation2 [shape = 'bf16[2,128,256]{2,1,0:T(16,128)(2,1)}', space=vmem, size = 0x20000, scoped, tag = 'scratch operand']
  #allocation9 [shape = 's32[]', space=sflag, size = 0x4, offset = 0, fixed_abs, tag = 'sflag constant byte address 0x0 - dummy sync flag']
  %s0 = inlined_call_operand.hbm [shape: bf16[4,2,128,256], index: 0, kind: input, shape index: {}]
  %s1 = inlined_call_operand.hbm [shape: bf16[4,2,128,256], index: 1, kind: input, shape index: {}]
  %s2 = inlined_call_operand.vmem [shape: f32[2,1,256], index: 2, kind: input, shape index: {}]
  %s3 = inlined_call_operand.hbm [shape: bf16[2,4,256,256], index: 3, kind: output, shape index: {}]
  %s4 = sld [smem:[#allocation0]]
  $region57: #{tpu_custom_call.1} parent=0
    _
  %s6 = ssub.s32 1, %s4
  %s7 = scalar_select 0, %s6, %s4
  $region1: #{tpu_custom_call.1} parent=0
    #allocation3 [shape = 'u8[262144]{0}', space=vmem, size = 0x40000, scoped, tag = 'input window, operand 0']
    #allocation4 [shape = 's32[2]{0}', space=sflag, size = 0x8, scoped, tag = 'scoped memory for tpu_custom_call.1']
    #allocation5 [shape = 's32[2]{0}', space=sflag, size = 0x8, scoped, tag = 'scoped memory for tpu_custom_call.1']
    #allocation6 [shape = 'u8[262144]{0}', space=vmem, size = 0x40000, scoped, tag = 'input window, operand 1']
    #allocation7 [shape = 's32[2]{0}', space=sflag, size = 0x8, scoped, tag = 'scoped memory for tpu_custom_call.1']
    #allocation8 [shape = 'u8[524288]{0}', space=vmem, size = 0x80000, scoped, tag = 'output window, operand 0']
    %8 = vsyncpa [#allocation4], 0
    %s9 = scalar_lea.sflag [#allocation4], 1
    %10 = vsyncpa %s9, 0
    %11 = vsyncpa [#allocation7], 0
    %s12 = scalar_lea.sflag [#allocation7], 1
    %13 = vsyncpa %s12, 0
    %14 = vsyncpa [#allocation5], 0
    %s15 = scalar_lea.sflag [#allocation5], 1
    %16 = vsyncpa %s15, 0
    loop: start=0, step=1, limit=6
    $region2: #{tpu_custom_call.1} parent=1 // loop_pre_header
      _
    $region3: #{tpu_custom_call.1} parent=1 // loop_header
      %s18 = sphi 0, %s22
      %p19 = scmp.ge.s32.totalorder %s18, 6
      %s25 = sphi 0, %s51
      %s26 = sphi 0, %s47
      %s27 = sphi 0, %s43
      %s28 = sphi 0, %s39
      %s29 = sphi 0, %s25
      %s30 = sphi 0, %s26
      %s31 = sphi 0, %s27
      %s32 = sphi 0, %s28
      %s33 = sphi 0, %s29
      %s34 = sphi 0, %s30
      %s35 = sphi 0, %s31
      %s36 = sphi 0, %s32
      %s58 = sphi 0, %s60
      %s61 = sphi 0, %s58
      %s62 = sphi 0, %s61
      %s78 = sphi 0, %s62
      %s88 = sphi 0, %s90
      %s91 = sphi 0, %s88
      %s92 = sphi 0, %s91
      %s108 = sphi 0, %s92
      %s116 = sphi 0, %s118
      %s119 = sphi 0, %s116
      %s120 = sphi 0, %s119
      %s136 = sphi 0, %s120
      %s148 = sphi 0, %s150
      %s151 = sphi 0, %s148
      %s152 = sphi 0, %s151
      %s168 = sphi 0, %s152
    $region4: #{tpu_custom_call.1} parent=1 // loop_header_branch
      %21 = sbr.rel (%p19) target = $region8
    $region5: #{tpu_custom_call.1} parent=1 // loop_body
      %s23 = ssub.s32 %s18, 1
      %s24 = ssub.s32 %s18, 2
      %s37 = sadd.s32 1, %s28
      %p38 = scmp.ge.s32.totalorder %s37, 1
      %s39 = scalar_select %p38, 0, %s37
      %s40 = sadd.s32 1, %s27
      %s41 = scalar_select %p38, %s40, %s27
      %p42 = scmp.ge.s32.totalorder %s41, 1
      %s43 = scalar_select %p42, 0, %s41
      %s44 = sadd.s32 1, %s26
      %s45 = scalar_select %p42, %s44, %s26
      %p46 = scmp.ge.s32.totalorder %s45, 4
      %s47 = scalar_select %p46, 0, %s45
      %s48 = sadd.s32 1, %s25
      %s49 = scalar_select %p46, %s48, %s25
      %p50 = scmp.ge.s32.totalorder %s49, 1
      %s51 = scalar_select %p50, 0, %s49
      %s52 = ssub.s32 %s26, %s47
      %s53 = ssub.s32 %s25, %s51
      %s54 = sor.u32 %s52, %s53
      %s55 = ssub.s32 %s27, %s43
      %s56 = sor.u32 %s54, %s55
      %p57 = scmp.eq.s32.totalorder %s56, 0
      %s59 = sadd.s32 %s58, 1
      %s60 = scalar_select %p57, %s58, %s59
      %p63 = pneg %p57
      %p64 = scmp.eq.s32.totalorder %s18, 3
      %p65 = por %p63, %p64
      %p66 = scmp.ne.s32.totalorder %s58, %s61
      %p67 = scmp.eq.s32.totalorder %s18, 0
      %p68 = por %p66, %p67
      %p69 = scmp.ne.s32.totalorder %s58, %s61
      %p70 = scmp.eq.s32.totalorder %s23, 3
      %p71 = por %p69, %p70
      %p72 = scmp.ne.s32.totalorder %s61, %s62
      %p73 = scmp.eq.s32.totalorder %s23, 0
      %p74 = por %p72, %p73
      %p75 = scmp.ne.s32.totalorder %s61, %s62
      %p76 = scmp.eq.s32.totalorder %s24, 3
      %p77 = por %p75, %p76
      %p79 = scmp.ne.s32.totalorder %s62, %s78
      %p80 = scmp.eq.s32.totalorder %s24, 0
      %p81 = por %p79, %p80
      %s82 = ssub.s32 %s26, %s47
      %s83 = ssub.s32 %s25, %s51
      %s84 = sor.u32 %s82, %s83
      %s85 = ssub.s32 %s28, %s39
      %s86 = sor.u32 %s84, %s85
      %p87 = scmp.eq.s32.totalorder %s86, 0
      %s89 = sadd.s32 %s88, 1
      %s90 = scalar_select %p87, %s88, %s89
      %p93 = pneg %p87
      %p94 = scmp.eq.s32.totalorder %s18, 3
      %p95 = por %p93, %p94
      %p96 = scmp.ne.s32.totalorder %s88, %s91
      %p97 = scmp.eq.s32.totalorder %s18, 0
      %p98 = por %p96, %p97
      %p99 = scmp.ne.s32.totalorder %s88, %s91
      %p100 = scmp.eq.s32.totalorder %s23, 3
      %p101 = por %p99, %p100
      %p102 = scmp.ne.s32.totalorder %s91, %s92
      %p103 = scmp.eq.s32.totalorder %s23, 0
      %p104 = por %p102, %p103
      %p105 = scmp.ne.s32.totalorder %s91, %s92
      %p106 = scmp.eq.s32.totalorder %s24, 3
      %p107 = por %p105, %p106
      %p109 = scmp.ne.s32.totalorder %s92, %s108
      %p110 = scmp.eq.s32.totalorder %s24, 0
      %p111 = por %p109, %p110
      %s112 = ssub.s32 %s25, %s51
      %s113 = ssub.s32 %s28, %s39
      %s114 = sor.u32 %s112, %s113
      %p115 = scmp.eq.s32.totalorder %s114, 0
      %s117 = sadd.s32 %s116, 1
      %s118 = scalar_select %p115, %s116, %s117
      %p121 = pneg %p115
      %p122 = scmp.eq.s32.totalorder %s18, 3
      %p123 = por %p121, %p122
      %p124 = scmp.ne.s32.totalorder %s116, %s119
      %p125 = scmp.eq.s32.totalorder %s18, 0
      %p126 = por %p124, %p125
      %p127 = scmp.ne.s32.totalorder %s116, %s119
      %p128 = scmp.eq.s32.totalorder %s23, 3
      %p129 = por %p127, %p128
      %p130 = scmp.ne.s32.totalorder %s119, %s120
      %p131 = scmp.eq.s32.totalorder %s23, 0
      %p132 = por %p130, %p131
      %p133 = scmp.ne.s32.totalorder %s119, %s120
      %p134 = scmp.eq.s32.totalorder %s24, 3
      %p135 = por %p133, %p134
      %p137 = scmp.ne.s32.totalorder %s120, %s136
      %p138 = scmp.eq.s32.totalorder %s24, 0
      %p139 = por %p137, %p138
      %s140 = ssub.s32 %s25, %s51
      %s141 = ssub.s32 %s26, %s47
      %s142 = sor.u32 %s140, %s141
      %s143 = ssub.s32 %s27, %s43
      %s144 = sor.u32 %s142, %s143
      %s145 = ssub.s32 %s28, %s39
      %s146 = sor.u32 %s144, %s145
      %p147 = scmp.eq.s32.totalorder %s146, 0
      %s149 = sadd.s32 %s148, 1
      %s150 = scalar_select %p147, %s148, %s149
      %p153 = pneg %p147
      %p154 = scmp.eq.s32.totalorder %s18, 3
      %p155 = por %p153, %p154
      %p156 = scmp.ne.s32.totalorder %s148, %s151
      %p157 = scmp.eq.s32.totalorder %s18, 0
      %p158 = por %p156, %p157
      %p159 = scmp.ne.s32.totalorder %s148, %s151
      %p160 = scmp.eq.s32.totalorder %s23, 3
      %p161 = por %p159, %p160
      %p162 = scmp.ne.s32.totalorder %s151, %s152
      %p163 = scmp.eq.s32.totalorder %s23, 0
      %p164 = por %p162, %p163
      %p165 = scmp.ne.s32.totalorder %s151, %s152
      %p166 = scmp.eq.s32.totalorder %s24, 3
      %p167 = por %p165, %p166
      %p169 = scmp.ne.s32.totalorder %s152, %s168
      %p170 = scmp.eq.s32.totalorder %s24, 0
      %p171 = por %p169, %p170
      %p172 = scmp.le.s32.totalorder 1, %s18
      %p173 = scmp.lt.s32.totalorder %s18, 5
      %p174 = pnand %p172, %p173
      %p175 = pneg %p174
      // Predicated region
      $region9: #{tpu_custom_call.1} parent=5 // pred_check
        _
      $region10: #{tpu_custom_call.1} parent=5 // pred_check_branch
        %177 = sbr.rel (%p174) target = $region12
      $region11: #{tpu_custom_call.1} parent=5 // pred_region
        %s178 = ssub.s32 %s18, 1
        // Predicated region
        $region13: #{tpu_custom_call.1} parent=11 // pred_check
          %p179 = pneg %p132
        $region14: #{tpu_custom_call.1} parent=11 // pred_check_branch
          %181 = sbr.rel (%p179) target = $region16
        $region15: #{tpu_custom_call.1} parent=11 // pred_region
          %s182 = smul.u32 2, %s29
          %s183 = smul.u32 2, %s32
          %p184 = scmp.lt.s32.totalorder %s182, 1
          %s185 = scalar_select %p184, %s182, 1
          %p186 = scmp.lt.s32.totalorder %s183, 1
          %s187 = scalar_select %p186, %s183, 1
          %s188 = smul.addr %s185, 2
          %s189 = sadd.s32 %s187, %s188
          %s190 = scalar_lea.vmem %s2, %s189
          %s191 = smul.u32 2, %s29
          %s192 = smul.u32 2, %s32
        $region16: #{tpu_custom_call.1} parent=11 // pred_fallthru
          _
      $region12: #{tpu_custom_call.1} parent=5 // pred_fallthru
        _
      %p193 = scmp.lt.s32.totalorder %s18, 4
      // Predicated region
      $region17: #{tpu_custom_call.1} parent=5 // pred_check
        %p194 = pneg %p193
      $region18: #{tpu_custom_call.1} parent=5 // pred_check_branch
        %196 = sbr.rel (%p194) target = $region20
      $region19: #{tpu_custom_call.1} parent=5 // pred_region
        // Predicated region
        $region21: #{tpu_custom_call.1} parent=19 // pred_check
          %p197 = pneg %p68
        $region22: #{tpu_custom_call.1} parent=19 // pred_check_branch
          %199 = sbr.rel (%p197) target = $region24
        $region23: #{tpu_custom_call.1} parent=19 // pred_region
          %s200 = sand.u32 %s58, 1
          %s201 = scalar_lea.sflag [#allocation4], %s200
          %s202 = sand.u32 %s58, 1
          %s203 = smul.addr %s202, 256
          %s204 = scalar_lea.vmem [#allocation3], %s203
          %s205 = smul.u32 2, %s25
          %s206 = smul.u32 2, %s27
          %s208 = ssub.s32 4096, 4096
          %209 = vsyncadd %s201, %s208
          %s210 = smul.addr %s205, 32
          %s211 = sadd.s32 %s206, %s210
          %s212 = smul.addr %s26, 64
          %s213 = sadd.s32 %s211, %s212
          %s214 = smul.addr %s213, 64
          %s215 = scalar_lea.hbm %s0, %s214
          %s216 = sshll.u32 %s204, 4
          %s217 = int_to_ptr.vmem [resolvable:$true] %s216
          %222 = dma.hbm_to_vmem [thread:$0]  %s215, 4096, %s217, %s201, 128, 128, 8
        $region24: #{tpu_custom_call.1} parent=19 // pred_fallthru
          _
        // Predicated region
        $region25: #{tpu_custom_call.1} parent=19 // pred_check
          %p223 = pneg %p98
        $region26: #{tpu_custom_call.1} parent=19 // pred_check_branch
          %225 = sbr.rel (%p223) target = $region28
        $region27: #{tpu_custom_call.1} parent=19 // pred_region
          %s226 = sand.u32 %s88, 1
          %s227 = scalar_lea.sflag [#allocation7], %s226
          %s228 = sand.u32 %s88, 1
          %s229 = smul.addr %s228, 256
          %s230 = scalar_lea.vmem [#allocation6], %s229
          %s231 = smul.u32 2, %s25
          %s232 = smul.u32 2, %s28
          %s234 = ssub.s32 4096, 4096
          %235 = vsyncadd %s227, %s234
          %s236 = smul.addr %s231, 32
          %s237 = sadd.s32 %s232, %s236
          %s238 = smul.addr %s26, 64
          %s239 = sadd.s32 %s237, %s238
          %s240 = smul.addr %s239, 64
          %s241 = scalar_lea.hbm %s1, %s240
          %s242 = sshll.u32 %s230, 4
          %s243 = int_to_ptr.vmem [resolvable:$true] %s242
          %248 = dma.hbm_to_vmem [thread:$0]  %s241, 4096, %s243, %s227, 128, 128, 8
        $region28: #{tpu_custom_call.1} parent=19 // pred_fallthru
          _
      $region20: #{tpu_custom_call.1} parent=5 // pred_fallthru
        _
      %p249 = scmp.le.s32.totalorder 1, %s18
      %p250 = scmp.lt.s32.totalorder %s18, 5
      %p251 = pnand %p249, %p250
      %p252 = pneg %p251
      // Predicated region
      $region29: #{tpu_custom_call.1} parent=5 // pred_check
        _
      $region30: #{tpu_custom_call.1} parent=5 // pred_check_branch
        %254 = sbr.rel (%p251) target = $region32
      $region31: #{tpu_custom_call.1} parent=5 // pred_region
        %s255 = ssub.s32 %s18, 1
        %s256 = sand.u32 %s61, 1
        %s257 = scalar_lea.sflag [#allocation4], %s256
        %s258 = sand.u32 %s61, 1
        %s259 = smul.addr %s258, 256
        %s260 = scalar_lea.vmem [#allocation3], %s259
        // Predicated region
        $region33: #{tpu_custom_call.1} parent=31 // pred_check
          %p261 = pneg %p74
        $region34: #{tpu_custom_call.1} parent=31 // pred_check_branch
          %263 = sbr.rel (%p261) target = $region36
        $region35: #{tpu_custom_call.1} parent=31 // pred_region
          %264 = dma.done %s257, 4096
        $region36: #{tpu_custom_call.1} parent=31 // pred_fallthru
          _
        %s265 = sand.u32 %s91, 1
        %s266 = scalar_lea.sflag [#allocation7], %s265
        %s267 = sand.u32 %s91, 1
        %s268 = smul.addr %s267, 256
        %s269 = scalar_lea.vmem [#allocation6], %s268
        // Predicated region
        $region37: #{tpu_custom_call.1} parent=31 // pred_check
          %p270 = pneg %p104
        $region38: #{tpu_custom_call.1} parent=31 // pred_check_branch
          %272 = sbr.rel (%p270) target = $region40
        $region39: #{tpu_custom_call.1} parent=31 // pred_region
          %273 = dma.done %s266, 4096
        $region40: #{tpu_custom_call.1} parent=31 // pred_fallthru
          _
        %s274 = sand.u32 %s61, 1
        %s275 = scalar_lea.sflag [#allocation4], %s274
        %s276 = sand.u32 %s61, 1
        %s277 = smul.addr %s276, 256
        %s278 = scalar_lea.vmem [#allocation3], %s277
        %p279 = pneg %p74
        %p280 = pneg %p71
        %s281 = sand.u32 %s91, 1
        %s282 = scalar_lea.sflag [#allocation7], %s281
        %s283 = sand.u32 %s91, 1
        %s284 = smul.addr %s283, 256
        %s285 = scalar_lea.vmem [#allocation6], %s284
        %p286 = pneg %p104
        %p287 = pneg %p101
        %s288 = smul.u32 2, %s29
        %s289 = smul.u32 2, %s32
        %p290 = scmp.lt.s32.totalorder %s288, 1
        %s291 = scalar_select %p290, %s288, 1
        %p292 = scmp.lt.s32.totalorder %s289, 1
        %s293 = scalar_select %p292, %s289, 1
        %s294 = smul.addr %s291, 2
        %s295 = sadd.s32 %s293, %s294
        %s296 = scalar_lea.vmem %s2, %s295
        %p297 = pneg %p132
        %p298 = pneg %p129
        %p299 = pneg %p164
        %p300 = pneg %p161
        %s301 = sand.u32 %s151, 1
        %s302 = scalar_lea.sflag [#allocation5], %s301
        %s303 = sand.u32 %s151, 1
        %s304 = smul.addr %s303, 512
        %s305 = scalar_lea.vmem [#allocation8], %s304
        %s306 = smul.u32 2, %s29
        %s307 = smul.u32 2, %s31
        %s308 = smul.u32 2, %s29
        %s309 = smul.u32 2, %s32
        %s310 = smul.u32 2, %s29
        %s311 = smul.u32 2, %s32
        %p312 = scmp.lt.s32.totalorder %s310, 1
        %s313 = scalar_select %p312, %s310, 1
        %p314 = scmp.lt.s32.totalorder %s311, 1
        %s315 = scalar_select %p314, %s311, 1
        %s316 = smul.addr %s313, 2
        %s317 = sadd.s32 %s315, %s316
        %s318 = scalar_lea.vmem %s2, %s317
        %s319 = smul.u32 2, %s29
        %s320 = smul.u32 2, %s32
        %s321 = smul.u32 2, %s29
        %s322 = smul.u32 32, %s31
        %s323 = smul.u32 2, %s32
        %p325 = scmp.eq.s32.totalorder %s32, 0
        // Predicated region
        $region41: #{tpu_custom_call.1} parent=31 // pred_check
          %p326 = pneg %p325
        $region42: #{tpu_custom_call.1} parent=31 // pred_check_branch
          %328 = sbr.rel (%p326) target = $region44
        $region43: #{tpu_custom_call.1} parent=31 // pred_region
          %v329 = vld [vmem:[%s260] sm:$0xff]
          %v330 = vld [vmem:[%s260 + $0x8] sm:$0xff]
          %v331 = vld [vmem:[%s260 + $0x10] sm:$0xff]
          %v332 = vld [vmem:[%s260 + $0x18] sm:$0xff]
          %v333 = vld [vmem:[%s260 + $0x20] sm:$0xff]
          %v334 = vld [vmem:[%s260 + $0x28] sm:$0xff]
          %v335 = vld [vmem:[%s260 + $0x30] sm:$0xff]
          %v336 = vld [vmem:[%s260 + $0x38] sm:$0xff]
          %v337 = vld [vmem:[%s260 + $0x40] sm:$0xff]
          %v338 = vld [vmem:[%s260 + $0x48] sm:$0xff]
          %v339 = vld [vmem:[%s260 + $0x50] sm:$0xff]
          %v340 = vld [vmem:[%s260 + $0x58] sm:$0xff]
          %v341 = vld [vmem:[%s260 + $0x60] sm:$0xff]
          %v342 = vld [vmem:[%s260 + $0x68] sm:$0xff]
          %v343 = vld [vmem:[%s260 + $0x70] sm:$0xff]
          %v344 = vld [vmem:[%s260 + $0x78] sm:$0xff]
          %v345 = vld [vmem:[%s260 + $0x80] sm:$0xff]
          %v346 = vld [vmem:[%s260 + $0x88] sm:$0xff]
          %v347 = vld [vmem:[%s260 + $0x90] sm:$0xff]
          %v348 = vld [vmem:[%s260 + $0x98] sm:$0xff]
          %v349 = vld [vmem:[%s260 + $0xa0] sm:$0xff]
          %v350 = vld [vmem:[%s260 + $0xa8] sm:$0xff]
          %v351 = vld [vmem:[%s260 + $0xb0] sm:$0xff]
          %v352 = vld [vmem:[%s260 + $0xb8] sm:$0xff]
          %v353 = vld [vmem:[%s260 + $0xc0] sm:$0xff]
          %v354 = vld [vmem:[%s260 + $0xc8] sm:$0xff]
          %v355 = vld [vmem:[%s260 + $0xd0] sm:$0xff]
          %v356 = vld [vmem:[%s260 + $0xd8] sm:$0xff]
          %v357 = vld [vmem:[%s260 + $0xe0] sm:$0xff]
          %v358 = vld [vmem:[%s260 + $0xe8] sm:$0xff]
          %v359 = vld [vmem:[%s260 + $0xf0] sm:$0xff]
          %v360 = vld [vmem:[%s260 + $0xf8] sm:$0xff]
          %v361 = vunpack.c.l.bf16 %v329
          %v362 = vunpack.c.h.bf16 %v329
          %v363 = vunpack.c.l.bf16 %v330
          %v364 = vunpack.c.h.bf16 %v330
          %v365 = vunpack.c.l.bf16 %v331
          %v366 = vunpack.c.h.bf16 %v331
          %v367 = vunpack.c.l.bf16 %v332
          %v368 = vunpack.c.h.bf16 %v332
          %v369 = vunpack.c.l.bf16 %v333
          %v370 = vunpack.c.h.bf16 %v333
          %v371 = vunpack.c.l.bf16 %v334
          %v372 = vunpack.c.h.bf16 %v334
          %v373 = vunpack.c.l.bf16 %v335
          %v374 = vunpack.c.h.bf16 %v335
          %v375 = vunpack.c.l.bf16 %v336
          %v376 = vunpack.c.h.bf16 %v336
          %v377 = vunpack.c.l.bf16 %v337
          %v378 = vunpack.c.h.bf16 %v337
          %v379 = vunpack.c.l.bf16 %v338
          %v380 = vunpack.c.h.bf16 %v338
          %v381 = vunpack.c.l.bf16 %v339
          %v382 = vunpack.c.h.bf16 %v339
          %v383 = vunpack.c.l.bf16 %v340
          %v384 = vunpack.c.h.bf16 %v340
          %v385 = vunpack.c.l.bf16 %v341
          %v386 = vunpack.c.h.bf16 %v341
          %v387 = vunpack.c.l.bf16 %v342
          %v388 = vunpack.c.h.bf16 %v342
          %v389 = vunpack.c.l.bf16 %v343
          %v390 = vunpack.c.h.bf16 %v343
          %v391 = vunpack.c.l.bf16 %v344
          %v392 = vunpack.c.h.bf16 %v344
          %v393 = vunpack.c.l.bf16 %v345
          %v394 = vunpack.c.h.bf16 %v345
          %v395 = vunpack.c.l.bf16 %v346
          %v396 = vunpack.c.h.bf16 %v346
          %v397 = vunpack.c.l.bf16 %v347
          %v398 = vunpack.c.h.bf16 %v347
          %v399 = vunpack.c.l.bf16 %v348
          %v400 = vunpack.c.h.bf16 %v348
          %v401 = vunpack.c.l.bf16 %v349
          %v402 = vunpack.c.h.bf16 %v349
          %v403 = vunpack.c.l.bf16 %v350
          %v404 = vunpack.c.h.bf16 %v350
          %v405 = vunpack.c.l.bf16 %v351
          %v406 = vunpack.c.h.bf16 %v351
          %v407 = vunpack.c.l.bf16 %v352
          %v408 = vunpack.c.h.bf16 %v352
          %v409 = vunpack.c.l.bf16 %v353
          %v410 = vunpack.c.h.bf16 %v353
          %v411 = vunpack.c.l.bf16 %v354
          %v412 = vunpack.c.h.bf16 %v354
          %v413 = vunpack.c.l.bf16 %v355
          %v414 = vunpack.c.h.bf16 %v355
          %v415 = vunpack.c.l.bf16 %v356
          %v416 = vunpack.c.h.bf16 %v356
          %v417 = vunpack.c.l.bf16 %v357
          %v418 = vunpack.c.h.bf16 %v357
          %v419 = vunpack.c.l.bf16 %v358
          %v420 = vunpack.c.h.bf16 %v358
          %v421 = vunpack.c.l.bf16 %v359
          %v422 = vunpack.c.h.bf16 %v359
          %v423 = vunpack.c.l.bf16 %v360
          %v424 = vunpack.c.h.bf16 %v360
          %v425 = vmul.f32 %v361, %v361
          %v426 = vmul.f32 %v362, %v362
          %v427 = vmul.f32 %v363, %v363
          %v428 = vmul.f32 %v364, %v364
          %v429 = vmul.f32 %v365, %v365
          %v430 = vmul.f32 %v366, %v366
          %v431 = vmul.f32 %v367, %v367
          %v432 = vmul.f32 %v368, %v368
          %v433 = vmul.f32 %v369, %v369
          %v434 = vmul.f32 %v370, %v370
          %v435 = vmul.f32 %v371, %v371
          %v436 = vmul.f32 %v372, %v372
          %v437 = vmul.f32 %v373, %v373
          %v438 = vmul.f32 %v374, %v374
          %v439 = vmul.f32 %v375, %v375
          %v440 = vmul.f32 %v376, %v376
          %v441 = vmul.f32 %v377, %v377
          %v442 = vmul.f32 %v378, %v378
          %v443 = vmul.f32 %v379, %v379
          %v444 = vmul.f32 %v380, %v380
          %v445 = vmul.f32 %v381, %v381
          %v446 = vmul.f32 %v382, %v382
          %v447 = vmul.f32 %v383, %v383
          %v448 = vmul.f32 %v384, %v384
          %v449 = vmul.f32 %v385, %v385
          %v450 = vmul.f32 %v386, %v386
          %v451 = vmul.f32 %v387, %v387
          %v452 = vmul.f32 %v388, %v388
          %v453 = vmul.f32 %v389, %v389
          %v454 = vmul.f32 %v390, %v390
          %v455 = vmul.f32 %v391, %v391
          %v456 = vmul.f32 %v392, %v392
          %v457 = vmul.f32 %v393, %v393
          %v458 = vmul.f32 %v394, %v394
          %v459 = vmul.f32 %v395, %v395
          %v460 = vmul.f32 %v396, %v396
          %v461 = vmul.f32 %v397, %v397
          %v462 = vmul.f32 %v398, %v398
          %v463 = vmul.f32 %v399, %v399
          %v464 = vmul.f32 %v400, %v400
          %v465 = vmul.f32 %v401, %v401
          %v466 = vmul.f32 %v402, %v402
          %v467 = vmul.f32 %v403, %v403
          %v468 = vmul.f32 %v404, %v404
          %v469 = vmul.f32 %v405, %v405
          %v470 = vmul.f32 %v406, %v406
          %v471 = vmul.f32 %v407, %v407
          %v472 = vmul.f32 %v408, %v408
          %v473 = vmul.f32 %v409, %v409
          %v474 = vmul.f32 %v410, %v410
          %v475 = vmul.f32 %v411, %v411
          %v476 = vmul.f32 %v412, %v412
          %v477 = vmul.f32 %v413, %v413
          %v478 = vmul.f32 %v414, %v414
          %v479 = vmul.f32 %v415, %v415
          %v480 = vmul.f32 %v416, %v416
          %v481 = vmul.f32 %v417, %v417
          %v482 = vmul.f32 %v418, %v418
          %v483 = vmul.f32 %v419, %v419
          %v484 = vmul.f32 %v420, %v420
          %v485 = vmul.f32 %v421, %v421
          %v486 = vmul.f32 %v422, %v422
          %v487 = vmul.f32 %v423, %v423
          %v488 = vmul.f32 %v424, %v424
          %v489 = vadd.f32 %v425, %v427
          %v490 = vadd.f32 %v489, %v429
          %v491 = vadd.f32 %v490, %v431
          %v492 = vadd.f32 %v491, %v433
          %v493 = vadd.f32 %v492, %v435
          %v494 = vadd.f32 %v493, %v437
          %v495 = vadd.f32 %v494, %v439
          %v496 = vadd.f32 %v495, %v441
          %v497 = vadd.f32 %v496, %v443
          %v498 = vadd.f32 %v497, %v445
          %v499 = vadd.f32 %v498, %v447
          %v500 = vadd.f32 %v499, %v449
          %v501 = vadd.f32 %v500, %v451
          %v502 = vadd.f32 %v501, %v453
          %v503 = vadd.f32 %v502, %v455
          %v504 = vrot.slane %v503, 4
          %v505 = vadd.f32 %v503, %v504
          %v506 = vrot.slane %v505, 2
          %v507 = vadd.f32 %v505, %v506
          %v508 = vrot.slane %v507, 1
          %v509 = vadd.f32 %v507, %v508
          %v510 = vadd.f32 %v426, %v428
          %v511 = vadd.f32 %v510, %v430
          %v512 = vadd.f32 %v511, %v432
          %v513 = vadd.f32 %v512, %v434
          %v514 = vadd.f32 %v513, %v436
          %v515 = vadd.f32 %v514, %v438
          %v516 = vadd.f32 %v515, %v440
          %v517 = vadd.f32 %v516, %v442
          %v518 = vadd.f32 %v517, %v444
          %v519 = vadd.f32 %v518, %v446
          %v520 = vadd.f32 %v519, %v448
          %v521 = vadd.f32 %v520, %v450
          %v522 = vadd.f32 %v521, %v452
          %v523 = vadd.f32 %v522, %v454
          %v524 = vadd.f32 %v523, %v456
          %v525 = vrot.slane %v524, 4
          %v526 = vadd.f32 %v524, %v525
          %v527 = vrot.slane %v526, 2
          %v528 = vadd.f32 %v526, %v527
          %v529 = vrot.slane %v528, 1
          %v530 = vadd.f32 %v528, %v529
          %v531 = vadd.f32 %v457, %v459
          %v532 = vadd.f32 %v531, %v461
          %v533 = vadd.f32 %v532, %v463
          %v534 = vadd.f32 %v533, %v465
          %v535 = vadd.f32 %v534, %v467
          %v536 = vadd.f32 %v535, %v469
          %v537 = vadd.f32 %v536, %v471
          %v538 = vadd.f32 %v537, %v473
          %v539 = vadd.f32 %v538, %v475
          %v540 = vadd.f32 %v539, %v477
          %v541 = vadd.f32 %v540, %v479
          %v542 = vadd.f32 %v541, %v481
          %v543 = vadd.f32 %v542, %v483
          %v544 = vadd.f32 %v543, %v485
          %v545 = vadd.f32 %v544, %v487
          %v546 = vrot.slane %v545, 4
          %v547 = vadd.f32 %v545, %v546
          %v548 = vrot.slane %v547, 2
          %v549 = vadd.f32 %v547, %v548
          %v550 = vrot.slane %v549, 1
          %v551 = vadd.f32 %v549, %v550
          %v552 = vadd.f32 %v458, %v460
          %v553 = vadd.f32 %v552, %v462
          %v554 = vadd.f32 %v553, %v464
          %v555 = vadd.f32 %v554, %v466
          %v556 = vadd.f32 %v555, %v468
          %v557 = vadd.f32 %v556, %v470
          %v558 = vadd.f32 %v557, %v472
          %v559 = vadd.f32 %v558, %v474
          %v560 = vadd.f32 %v559, %v476
          %v561 = vadd.f32 %v560, %v478
          %v562 = vadd.f32 %v561, %v480
          %v563 = vadd.f32 %v562, %v482
          %v564 = vadd.f32 %v563, %v484
          %v565 = vadd.f32 %v564, %v486
          %v566 = vadd.f32 %v565, %v488
          %v567 = vrot.slane %v566, 4
          %v568 = vadd.f32 %v566, %v567
          %v569 = vrot.slane %v568, 2
          %v570 = vadd.f32 %v568, %v569
          %v571 = vrot.slane %v570, 1
          %v572 = vadd.f32 %v570, %v571
          %v573 = vrsqrt.pop %v509
          %v574 = vmul.f32 %v509, %v573
          %vm575 = vcmp.eq.f32.partialorder %v509, inf
          %v576 = vsel %vm575, %v509, %v574
          %vm577 = vcmp.eq.f32.partialorder %v509, 0.0
          %v578 = vand.u32 %v509, 2147483648
          %v579 = vsel %vm577, %v578, %v576
          %v580 = vrsqrt.pop %v530
          %v581 = vmul.f32 %v530, %v580
          %vm582 = vcmp.eq.f32.partialorder %v530, inf
          %v583 = vsel %vm582, %v530, %v581
          %vm584 = vcmp.eq.f32.partialorder %v530, 0.0
          %v585 = vand.u32 %v530, 2147483648
          %v586 = vsel %vm584, %v585, %v583
          %v587 = vrsqrt.pop %v551
          %v588 = vmul.f32 %v551, %v587
          %vm589 = vcmp.eq.f32.partialorder %v551, inf
          %v590 = vsel %vm589, %v551, %v588
          %vm591 = vcmp.eq.f32.partialorder %v551, 0.0
          %v592 = vand.u32 %v551, 2147483648
          %v593 = vsel %vm591, %v592, %v590
          %v594 = vrsqrt.pop %v572
          %v595 = vmul.f32 %v572, %v594
          %vm596 = vcmp.eq.f32.partialorder %v572, inf
          %v597 = vsel %vm596, %v572, %v595
          %vm598 = vcmp.eq.f32.partialorder %v572, 0.0
          %v599 = vand.u32 %v572, 2147483648
          %v600 = vsel %vm598, %v599, %v597
          %v601 = vadd.f32 %v579, 1e-05
          %v602 = vadd.f32 %v586, 1e-05
          %v603 = vadd.f32 %v593, 1e-05
          %v604 = vadd.f32 %v600, 1e-05
          %v605 = vrcp.pop %v601
          %v606 = vrcp.pop %v602
          %v607 = vrcp.pop %v603
          %v608 = vrcp.pop %v604
          %v609 = vmul.f32 %v361, %v605
          %v610 = vmul.f32 %v362, %v606
          %v611 = vmul.f32 %v363, %v605
          %v612 = vmul.f32 %v364, %v606
          %v613 = vmul.f32 %v365, %v605
          %v614 = vmul.f32 %v366, %v606
          %v615 = vmul.f32 %v367, %v605
          %v616 = vmul.f32 %v368, %v606
          %v617 = vmul.f32 %v369, %v605
          %v618 = vmul.f32 %v370, %v606
          %v619 = vmul.f32 %v371, %v605
          %v620 = vmul.f32 %v372, %v606
          %v621 = vmul.f32 %v373, %v605
          %v622 = vmul.f32 %v374, %v606
          %v623 = vmul.f32 %v375, %v605
          %v624 = vmul.f32 %v376, %v606
          %v625 = vmul.f32 %v377, %v605
          %v626 = vmul.f32 %v378, %v606
          %v627 = vmul.f32 %v379, %v605
          %v628 = vmul.f32 %v380, %v606
          %v629 = vmul.f32 %v381, %v605
          %v630 = vmul.f32 %v382, %v606
          %v631 = vmul.f32 %v383, %v605
          %v632 = vmul.f32 %v384, %v606
          %v633 = vmul.f32 %v385, %v605
          %v634 = vmul.f32 %v386, %v606
          %v635 = vmul.f32 %v387, %v605
          %v636 = vmul.f32 %v388, %v606
          %v637 = vmul.f32 %v389, %v605
          %v638 = vmul.f32 %v390, %v606
          %v639 = vmul.f32 %v391, %v605
          %v640 = vmul.f32 %v392, %v606
          %v641 = vmul.f32 %v393, %v607
          %v642 = vmul.f32 %v394, %v608
          %v643 = vmul.f32 %v395, %v607
          %v644 = vmul.f32 %v396, %v608
          %v645 = vmul.f32 %v397, %v607
          %v646 = vmul.f32 %v398, %v608
          %v647 = vmul.f32 %v399, %v607
          %v648 = vmul.f32 %v400, %v608
          %v649 = vmul.f32 %v401, %v607
          %v650 = vmul.f32 %v402, %v608
          %v651 = vmul.f32 %v403, %v607
          %v652 = vmul.f32 %v404, %v608
          %v653 = vmul.f32 %v405, %v607
          %v654 = vmul.f32 %v406, %v608
          %v655 = vmul.f32 %v407, %v607
          %v656 = vmul.f32 %v408, %v608
          %v657 = vmul.f32 %v409, %v607
          %v658 = vmul.f32 %v410, %v608
          %v659 = vmul.f32 %v411, %v607
          %v660 = vmul.f32 %v412, %v608
          %v661 = vmul.f32 %v413, %v607
          %v662 = vmul.f32 %v414, %v608
          %v663 = vmul.f32 %v415, %v607
          %v664 = vmul.f32 %v416, %v608
          %v665 = vmul.f32 %v417, %v607
          %v666 = vmul.f32 %v418, %v608
          %v667 = vmul.f32 %v419, %v607
          %v668 = vmul.f32 %v420, %v608
          %v669 = vmul.f32 %v421, %v607
          %v670 = vmul.f32 %v422, %v608
          %v671 = vmul.f32 %v423, %v607
          %v672 = vmul.f32 %v424, %v608
          %v673 = vpack.c.bf16 %v611, %v609
          %v674 = vpack.c.bf16 %v612, %v610
          %v675 = vpack.c.bf16 %v615, %v613
          %v676 = vpack.c.bf16 %v616, %v614
          %v677 = vpack.c.bf16 %v619, %v617
          %v678 = vpack.c.bf16 %v620, %v618
          %v679 = vpack.c.bf16 %v623, %v621
          %v680 = vpack.c.bf16 %v624, %v622
          %v681 = vpack.c.bf16 %v627, %v625
          %v682 = vpack.c.bf16 %v628, %v626
          %v683 = vpack.c.bf16 %v631, %v629
          %v684 = vpack.c.bf16 %v632, %v630
          %v685 = vpack.c.bf16 %v635, %v633
          %v686 = vpack.c.bf16 %v636, %v634
          %v687 = vpack.c.bf16 %v639, %v637
          %v688 = vpack.c.bf16 %v640, %v638
          %v689 = vpack.c.bf16 %v643, %v641
          %v690 = vpack.c.bf16 %v644, %v642
          %v691 = vpack.c.bf16 %v647, %v645
          %v692 = vpack.c.bf16 %v648, %v646
          %v693 = vpack.c.bf16 %v651, %v649
          %v694 = vpack.c.bf16 %v652, %v650
          %v695 = vpack.c.bf16 %v655, %v653
          %v696 = vpack.c.bf16 %v656, %v654
          %v697 = vpack.c.bf16 %v659, %v657
          %v698 = vpack.c.bf16 %v660, %v658
          %v699 = vpack.c.bf16 %v663, %v661
          %v700 = vpack.c.bf16 %v664, %v662
          %v701 = vpack.c.bf16 %v667, %v665
          %v702 = vpack.c.bf16 %v668, %v666
          %v703 = vpack.c.bf16 %v671, %v669
          %v704 = vpack.c.bf16 %v672, %v670
          %705 = vst [vmem:[#allocation2] sm:$0xff] %v673
          %706 = vst [vmem:[#allocation2 + $0x8] sm:$0xff] %v674
          %707 = vst [vmem:[#allocation2 + $0x10] sm:$0xff] %v675
          %708 = vst [vmem:[#allocation2 + $0x18] sm:$0xff] %v676
          %709 = vst [vmem:[#allocation2 + $0x20] sm:$0xff] %v677
          %710 = vst [vmem:[#allocation2 + $0x28] sm:$0xff] %v678
          %711 = vst [vmem:[#allocation2 + $0x30] sm:$0xff] %v679
          %712 = vst [vmem:[#allocation2 + $0x38] sm:$0xff] %v680
          %713 = vst [vmem:[#allocation2 + $0x40] sm:$0xff] %v681
          %714 = vst [vmem:[#allocation2 + $0x48] sm:$0xff] %v682
          %715 = vst [vmem:[#allocation2 + $0x50] sm:$0xff] %v683
          %716 = vst [vmem:[#allocation2 + $0x58] sm:$0xff] %v684
          %717 = vst [vmem:[#allocation2 + $0x60] sm:$0xff] %v685
          %718 = vst [vmem:[#allocation2 + $0x68] sm:$0xff] %v686
          %719 = vst [vmem:[#allocation2 + $0x70] sm:$0xff] %v687
          %720 = vst [vmem:[#allocation2 + $0x78] sm:$0xff] %v688
          %721 = vst [vmem:[#allocation2 + $0x80] sm:$0xff] %v689
          %722 = vst [vmem:[#allocation2 + $0x88] sm:$0xff] %v690
          %723 = vst [vmem:[#allocation2 + $0x90] sm:$0xff] %v691
          %724 = vst [vmem:[#allocation2 + $0x98] sm:$0xff] %v692
          %725 = vst [vmem:[#allocation2 + $0xa0] sm:$0xff] %v693
          %726 = vst [vmem:[#allocation2 + $0xa8] sm:$0xff] %v694
          %727 = vst [vmem:[#allocation2 + $0xb0] sm:$0xff] %v695
          %728 = vst [vmem:[#allocation2 + $0xb8] sm:$0xff] %v696
          %729 = vst [vmem:[#allocation2 + $0xc0] sm:$0xff] %v697
          %730 = vst [vmem:[#allocation2 + $0xc8] sm:$0xff] %v698
          %731 = vst [vmem:[#allocation2 + $0xd0] sm:$0xff] %v699
          %732 = vst [vmem:[#allocation2 + $0xd8] sm:$0xff] %v700
          %733 = vst [vmem:[#allocation2 + $0xe0] sm:$0xff] %v701
          %734 = vst [vmem:[#allocation2 + $0xe8] sm:$0xff] %v702
          %735 = vst [vmem:[#allocation2 + $0xf0] sm:$0xff] %v703
          %736 = vst [vmem:[#allocation2 + $0xf8] sm:$0xff] %v704
        $region44: #{tpu_custom_call.1} parent=31 // pred_fallthru
          _
        %v737 = vld [vmem:[%s269] sm:$0xff]
        %v738 = vld [vmem:[%s269 + $0x8] sm:$0xff]
        %v739 = vld [vmem:[%s269 + $0x10] sm:$0xff]
        %v740 = vld [vmem:[%s269 + $0x18] sm:$0xff]
        %v741 = vld [vmem:[%s269 + $0x20] sm:$0xff]
        %v742 = vld [vmem:[%s269 + $0x28] sm:$0xff]
        %v743 = vld [vmem:[%s269 + $0x30] sm:$0xff]
        %v744 = vld [vmem:[%s269 + $0x38] sm:$0xff]
        %v745 = vld [vmem:[%s269 + $0x40] sm:$0xff]
        %v746 = vld [vmem:[%s269 + $0x48] sm:$0xff]
        %v747 = vld [vmem:[%s269 + $0x50] sm:$0xff]
        %v748 = vld [vmem:[%s269 + $0x58] sm:$0xff]
        %v749 = vld [vmem:[%s269 + $0x60] sm:$0xff]
        %v750 = vld [vmem:[%s269 + $0x68] sm:$0xff]
        %v751 = vld [vmem:[%s269 + $0x70] sm:$0xff]
        %v752 = vld [vmem:[%s269 + $0x78] sm:$0xff]
        %v753 = vld [vmem:[%s269 + $0x80] sm:$0xff]
        %v754 = vld [vmem:[%s269 + $0x88] sm:$0xff]
        %v755 = vld [vmem:[%s269 + $0x90] sm:$0xff]
        %v756 = vld [vmem:[%s269 + $0x98] sm:$0xff]
        %v757 = vld [vmem:[%s269 + $0xa0] sm:$0xff]
        %v758 = vld [vmem:[%s269 + $0xa8] sm:$0xff]
        %v759 = vld [vmem:[%s269 + $0xb0] sm:$0xff]
        %v760 = vld [vmem:[%s269 + $0xb8] sm:$0xff]
        %v761 = vld [vmem:[%s269 + $0xc0] sm:$0xff]
        %v762 = vld [vmem:[%s269 + $0xc8] sm:$0xff]
        %v763 = vld [vmem:[%s269 + $0xd0] sm:$0xff]
        %v764 = vld [vmem:[%s269 + $0xd8] sm:$0xff]
        %v765 = vld [vmem:[%s269 + $0xe0] sm:$0xff]
        %v766 = vld [vmem:[%s269 + $0xe8] sm:$0xff]
        %v767 = vld [vmem:[%s269 + $0xf0] sm:$0xff]
        %v768 = vld [vmem:[%s269 + $0xf8] sm:$0xff]
        %v769 = vunpack.c.l.bf16 %v737
        %v770 = vunpack.c.h.bf16 %v737
        %v771 = vunpack.c.l.bf16 %v738
        %v772 = vunpack.c.h.bf16 %v738
        %v773 = vunpack.c.l.bf16 %v739
        %v774 = vunpack.c.h.bf16 %v739
        %v775 = vunpack.c.l.bf16 %v740
        %v776 = vunpack.c.h.bf16 %v740
        %v777 = vunpack.c.l.bf16 %v741
        %v778 = vunpack.c.h.bf16 %v741
        %v779 = vunpack.c.l.bf16 %v742
        %v780 = vunpack.c.h.bf16 %v742
        %v781 = vunpack.c.l.bf16 %v743
        %v782 = vunpack.c.h.bf16 %v743
        %v783 = vunpack.c.l.bf16 %v744
        %v784 = vunpack.c.h.bf16 %v744
        %v785 = vunpack.c.l.bf16 %v745
        %v786 = vunpack.c.h.bf16 %v745
        %v787 = vunpack.c.l.bf16 %v746
        %v788 = vunpack.c.h.bf16 %v746
        %v789 = vunpack.c.l.bf16 %v747
        %v790 = vunpack.c.h.bf16 %v747
        %v791 = vunpack.c.l.bf16 %v748
        %v792 = vunpack.c.h.bf16 %v748
        %v793 = vunpack.c.l.bf16 %v749
        %v794 = vunpack.c.h.bf16 %v749
        %v795 = vunpack.c.l.bf16 %v750
        %v796 = vunpack.c.h.bf16 %v750
        %v797 = vunpack.c.l.bf16 %v751
        %v798 = vunpack.c.h.bf16 %v751
        %v799 = vunpack.c.l.bf16 %v752
        %v800 = vunpack.c.h.bf16 %v752
        %v801 = vunpack.c.l.bf16 %v753
        %v802 = vunpack.c.h.bf16 %v753
        %v803 = vunpack.c.l.bf16 %v754
        %v804 = vunpack.c.h.bf16 %v754
        %v805 = vunpack.c.l.bf16 %v755
        %v806 = vunpack.c.h.bf16 %v755
        %v807 = vunpack.c.l.bf16 %v756
        %v808 = vunpack.c.h.bf16 %v756
        %v809 = vunpack.c.l.bf16 %v757
        %v810 = vunpack.c.h.bf16 %v757
        %v811 = vunpack.c.l.bf16 %v758
        %v812 = vunpack.c.h.bf16 %v758
        %v813 = vunpack.c.l.bf16 %v759
        %v814 = vunpack.c.h.bf16 %v759
        %v815 = vunpack.c.l.bf16 %v760
        %v816 = vunpack.c.h.bf16 %v760
        %v817 = vunpack.c.l.bf16 %v761
        %v818 = vunpack.c.h.bf16 %v761
        %v819 = vunpack.c.l.bf16 %v762
        %v820 = vunpack.c.h.bf16 %v762
        %v821 = vunpack.c.l.bf16 %v763
        %v822 = vunpack.c.h.bf16 %v763
        %v823 = vunpack.c.l.bf16 %v764
        %v824 = vunpack.c.h.bf16 %v764
        %v825 = vunpack.c.l.bf16 %v765
        %v826 = vunpack.c.h.bf16 %v765
        %v827 = vunpack.c.l.bf16 %v766
        %v828 = vunpack.c.h.bf16 %v766
        %v829 = vunpack.c.l.bf16 %v767
        %v830 = vunpack.c.h.bf16 %v767
        %v831 = vunpack.c.l.bf16 %v768
        %v832 = vunpack.c.h.bf16 %v768
        %v833 = vld [vmem:[%s318] sm:$0x3]
        %v834 = vld [vmem:[%s318 + $0x2] sm:$0x3]
        %v837 = vlaneseq
        %v838 = vshrl.u32 %v837, 7
        %v839 = vsub.s32 0, %v838
        %v840 = vrot.slane %v833, %v839
        %v841 = vlaneseq
        %v842 = vshrl.u32 %v841, 7
        %v843 = vsub.s32 1, %v842
        %v844 = vrot.slane %v833, %v843
        %v845 = vlaneseq
        %v846 = vshrl.u32 %v845, 7
        %v847 = vsub.s32 0, %v846
        %v848 = vrot.slane %v834, %v847
        %v849 = vlaneseq
        %v850 = vshrl.u32 %v849, 7
        %v851 = vsub.s32 1, %v850
        %v852 = vrot.slane %v834, %v851
        %v857 = vmul.f32 %v769, %v840
        %v858 = vmul.f32 %v770, %v844
        %v859 = vmul.f32 %v771, %v840
        %v860 = vmul.f32 %v772, %v844
        %v861 = vmul.f32 %v773, %v840
        %v862 = vmul.f32 %v774, %v844
        %v863 = vmul.f32 %v775, %v840
        %v864 = vmul.f32 %v776, %v844
        %v865 = vmul.f32 %v777, %v840
        %v866 = vmul.f32 %v778, %v844
        %v867 = vmul.f32 %v779, %v840
        %v868 = vmul.f32 %v780, %v844
        %v869 = vmul.f32 %v781, %v840
        %v870 = vmul.f32 %v782, %v844
        %v871 = vmul.f32 %v783, %v840
        %v872 = vmul.f32 %v784, %v844
        %v873 = vmul.f32 %v785, %v840
        %v874 = vmul.f32 %v786, %v844
        %v875 = vmul.f32 %v787, %v840
        %v876 = vmul.f32 %v788, %v844
        %v877 = vmul.f32 %v789, %v840
        %v878 = vmul.f32 %v790, %v844
        %v879 = vmul.f32 %v791, %v840
        %v880 = vmul.f32 %v792, %v844
        %v881 = vmul.f32 %v793, %v840
        %v882 = vmul.f32 %v794, %v844
        %v883 = vmul.f32 %v795, %v840
        %v884 = vmul.f32 %v796, %v844
        %v885 = vmul.f32 %v797, %v840
        %v886 = vmul.f32 %v798, %v844
        %v887 = vmul.f32 %v799, %v840
        %v888 = vmul.f32 %v800, %v844
        %v889 = vmul.f32 %v801, %v848
        %v890 = vmul.f32 %v802, %v852
        %v891 = vmul.f32 %v803, %v848
        %v892 = vmul.f32 %v804, %v852
        %v893 = vmul.f32 %v805, %v848
        %v894 = vmul.f32 %v806, %v852
        %v895 = vmul.f32 %v807, %v848
        %v896 = vmul.f32 %v808, %v852
        %v897 = vmul.f32 %v809, %v848
        %v898 = vmul.f32 %v810, %v852
        %v899 = vmul.f32 %v811, %v848
        %v900 = vmul.f32 %v812, %v852
        %v901 = vmul.f32 %v813, %v848
        %v902 = vmul.f32 %v814, %v852
        %v903 = vmul.f32 %v815, %v848
        %v904 = vmul.f32 %v816, %v852
        %v905 = vmul.f32 %v817, %v848
        %v906 = vmul.f32 %v818, %v852
        %v907 = vmul.f32 %v819, %v848
        %v908 = vmul.f32 %v820, %v852
        %v909 = vmul.f32 %v821, %v848
        %v910 = vmul.f32 %v822, %v852
        %v911 = vmul.f32 %v823, %v848
        %v912 = vmul.f32 %v824, %v852
        %v913 = vmul.f32 %v825, %v848
        %v914 = vmul.f32 %v826, %v852
        %v915 = vmul.f32 %v827, %v848
        %v916 = vmul.f32 %v828, %v852
        %v917 = vmul.f32 %v829, %v848
        %v918 = vmul.f32 %v830, %v852
        %v919 = vmul.f32 %v831, %v848
        %v920 = vmul.f32 %v832, %v852
        %v921 = vmul.f32 %v857, %v857
        %v922 = vmul.f32 %v858, %v858
        %v923 = vmul.f32 %v859, %v859
        %v924 = vmul.f32 %v860, %v860
        %v925 = vmul.f32 %v861, %v861
        %v926 = vmul.f32 %v862, %v862
        %v927 = vmul.f32 %v863, %v863
        %v928 = vmul.f32 %v864, %v864
        %v929 = vmul.f32 %v865, %v865
        %v930 = vmul.f32 %v866, %v866
        %v931 = vmul.f32 %v867, %v867
        %v932 = vmul.f32 %v868, %v868
        %v933 = vmul.f32 %v869, %v869
        %v934 = vmul.f32 %v870, %v870
        %v935 = vmul.f32 %v871, %v871
        %v936 = vmul.f32 %v872, %v872
        %v937 = vmul.f32 %v873, %v873
        %v938 = vmul.f32 %v874, %v874
        %v939 = vmul.f32 %v875, %v875
        %v940 = vmul.f32 %v876, %v876
        %v941 = vmul.f32 %v877, %v877
        %v942 = vmul.f32 %v878, %v878
        %v943 = vmul.f32 %v879, %v879
        %v944 = vmul.f32 %v880, %v880
        %v945 = vmul.f32 %v881, %v881
        %v946 = vmul.f32 %v882, %v882
        %v947 = vmul.f32 %v883, %v883
        %v948 = vmul.f32 %v884, %v884
        %v949 = vmul.f32 %v885, %v885
        %v950 = vmul.f32 %v886, %v886
        %v951 = vmul.f32 %v887, %v887
        %v952 = vmul.f32 %v888, %v888
        %v953 = vmul.f32 %v889, %v889
        %v954 = vmul.f32 %v890, %v890
        %v955 = vmul.f32 %v891, %v891
        %v956 = vmul.f32 %v892, %v892
        %v957 = vmul.f32 %v893, %v893
        %v958 = vmul.f32 %v894, %v894
        %v959 = vmul.f32 %v895, %v895
        %v960 = vmul.f32 %v896, %v896
        %v961 = vmul.f32 %v897, %v897
        %v962 = vmul.f32 %v898, %v898
        %v963 = vmul.f32 %v899, %v899
        %v964 = vmul.f32 %v900, %v900
        %v965 = vmul.f32 %v901, %v901
        %v966 = vmul.f32 %v902, %v902
        %v967 = vmul.f32 %v903, %v903
        %v968 = vmul.f32 %v904, %v904
        %v969 = vmul.f32 %v905, %v905
        %v970 = vmul.f32 %v906, %v906
        %v971 = vmul.f32 %v907, %v907
        %v972 = vmul.f32 %v908, %v908
        %v973 = vmul.f32 %v909, %v909
        %v974 = vmul.f32 %v910, %v910
        %v975 = vmul.f32 %v911, %v911
        %v976 = vmul.f32 %v912, %v912
        %v977 = vmul.f32 %v913, %v913
        %v978 = vmul.f32 %v914, %v914
        %v979 = vmul.f32 %v915, %v915
        %v980 = vmul.f32 %v916, %v916
        %v981 = vmul.f32 %v917, %v917
        %v982 = vmul.f32 %v918, %v918
        %v983 = vmul.f32 %v919, %v919
        %v984 = vmul.f32 %v920, %v920
        %v985 = vadd.f32 %v921, %v923
        %v986 = vadd.f32 %v985, %v925
        %v987 = vadd.f32 %v986, %v927
        %v988 = vadd.f32 %v987, %v929
        %v989 = vadd.f32 %v988, %v931
        %v990 = vadd.f32 %v989, %v933
        %v991 = vadd.f32 %v990, %v935
        %v992 = vadd.f32 %v991, %v937
        %v993 = vadd.f32 %v992, %v939
        %v994 = vadd.f32 %v993, %v941
        %v995 = vadd.f32 %v994, %v943
        %v996 = vadd.f32 %v995, %v945
        %v997 = vadd.f32 %v996, %v947
        %v998 = vadd.f32 %v997, %v949
        %v999 = vadd.f32 %v998, %v951
        %v1000 = vrot.slane %v999, 4
        %v1001 = vadd.f32 %v999, %v1000
        %v1002 = vrot.slane %v1001, 2
        %v1003 = vadd.f32 %v1001, %v1002
        %v1004 = vrot.slane %v1003, 1
        %v1005 = vadd.f32 %v1003, %v1004
        %v1006 = vadd.f32 %v922, %v924
        %v1007 = vadd.f32 %v1006, %v926
        %v1008 = vadd.f32 %v1007, %v928
        %v1009 = vadd.f32 %v1008, %v930
        %v1010 = vadd.f32 %v1009, %v932
        %v1011 = vadd.f32 %v1010, %v934
        %v1012 = vadd.f32 %v1011, %v936
        %v1013 = vadd.f32 %v1012, %v938
        %v1014 = vadd.f32 %v1013, %v940
        %v1015 = vadd.f32 %v1014, %v942
        %v1016 = vadd.f32 %v1015, %v944
        %v1017 = vadd.f32 %v1016, %v946
        %v1018 = vadd.f32 %v1017, %v948
        %v1019 = vadd.f32 %v1018, %v950
        %v1020 = vadd.f32 %v1019, %v952
        %v1021 = vrot.slane %v1020, 4
        %v1022 = vadd.f32 %v1020, %v1021
        %v1023 = vrot.slane %v1022, 2
        %v1024 = vadd.f32 %v1022, %v1023
        %v1025 = vrot.slane %v1024, 1
        %v1026 = vadd.f32 %v1024, %v1025
        %v1027 = vadd.f32 %v953, %v955
        %v1028 = vadd.f32 %v1027, %v957
        %v1029 = vadd.f32 %v1028, %v959
        %v1030 = vadd.f32 %v1029, %v961
        %v1031 = vadd.f32 %v1030, %v963
        %v1032 = vadd.f32 %v1031, %v965
        %v1033 = vadd.f32 %v1032, %v967
        %v1034 = vadd.f32 %v1033, %v969
        %v1035 = vadd.f32 %v1034, %v971
        %v1036 = vadd.f32 %v1035, %v973
        %v1037 = vadd.f32 %v1036, %v975
        %v1038 = vadd.f32 %v1037, %v977
        %v1039 = vadd.f32 %v1038, %v979
        %v1040 = vadd.f32 %v1039, %v981
        %v1041 = vadd.f32 %v1040, %v983
        %v1042 = vrot.slane %v1041, 4
        %v1043 = vadd.f32 %v1041, %v1042
        %v1044 = vrot.slane %v1043, 2
        %v1045 = vadd.f32 %v1043, %v1044
        %v1046 = vrot.slane %v1045, 1
        %v1047 = vadd.f32 %v1045, %v1046
        %v1048 = vadd.f32 %v954, %v956
        %v1049 = vadd.f32 %v1048, %v958
        %v1050 = vadd.f32 %v1049, %v960
        %v1051 = vadd.f32 %v1050, %v962
        %v1052 = vadd.f32 %v1051, %v964
        %v1053 = vadd.f32 %v1052, %v966
        %v1054 = vadd.f32 %v1053, %v968
        %v1055 = vadd.f32 %v1054, %v970
        %v1056 = vadd.f32 %v1055, %v972
        %v1057 = vadd.f32 %v1056, %v974
        %v1058 = vadd.f32 %v1057, %v976
        %v1059 = vadd.f32 %v1058, %v978
        %v1060 = vadd.f32 %v1059, %v980
        %v1061 = vadd.f32 %v1060, %v982
        %v1062 = vadd.f32 %v1061, %v984
        %v1063 = vrot.slane %v1062, 4
        %v1064 = vadd.f32 %v1062, %v1063
        %v1065 = vrot.slane %v1064, 2
        %v1066 = vadd.f32 %v1064, %v1065
        %v1067 = vrot.slane %v1066, 1
        %v1068 = vadd.f32 %v1066, %v1067
        %v1069 = vrsqrt.pop %v1005
        %v1070 = vmul.f32 %v1005, %v1069
        %vm1071 = vcmp.eq.f32.partialorder %v1005, inf
        %v1072 = vsel %vm1071, %v1005, %v1070
        %vm1073 = vcmp.eq.f32.partialorder %v1005, 0.0
        %v1074 = vand.u32 %v1005, 2147483648
        %v1075 = vsel %vm1073, %v1074, %v1072
        %v1076 = vrsqrt.pop %v1026
        %v1077 = vmul.f32 %v1026, %v1076
        %vm1078 = vcmp.eq.f32.partialorder %v1026, inf
        %v1079 = vsel %vm1078, %v1026, %v1077
        %vm1080 = vcmp.eq.f32.partialorder %v1026, 0.0
        %v1081 = vand.u32 %v1026, 2147483648
        %v1082 = vsel %vm1080, %v1081, %v1079
        %v1083 = vrsqrt.pop %v1047
        %v1084 = vmul.f32 %v1047, %v1083
        %vm1085 = vcmp.eq.f32.partialorder %v1047, inf
        %v1086 = vsel %vm1085, %v1047, %v1084
        %vm1087 = vcmp.eq.f32.partialorder %v1047, 0.0
        %v1088 = vand.u32 %v1047, 2147483648
        %v1089 = vsel %vm1087, %v1088, %v1086
        %v1090 = vrsqrt.pop %v1068
        %v1091 = vmul.f32 %v1068, %v1090
        %vm1092 = vcmp.eq.f32.partialorder %v1068, inf
        %v1093 = vsel %vm1092, %v1068, %v1091
        %vm1094 = vcmp.eq.f32.partialorder %v1068, 0.0
        %v1095 = vand.u32 %v1068, 2147483648
        %v1096 = vsel %vm1094, %v1095, %v1093
        %v1097 = vadd.f32 %v1075, 1e-05
        %v1098 = vadd.f32 %v1082, 1e-05
        %v1099 = vadd.f32 %v1089, 1e-05
        %v1100 = vadd.f32 %v1096, 1e-05
        %v1101 = vrcp.pop %v1097
        %v1102 = vrcp.pop %v1098
        %v1103 = vrcp.pop %v1099
        %v1104 = vrcp.pop %v1100
        %v1105 = vmul.f32 %v857, %v1101
        %v1106 = vmul.f32 %v858, %v1102
        %v1107 = vmul.f32 %v859, %v1101
        %v1108 = vmul.f32 %v860, %v1102
        %v1109 = vmul.f32 %v861, %v1101
        %v1110 = vmul.f32 %v862, %v1102
        %v1111 = vmul.f32 %v863, %v1101
        %v1112 = vmul.f32 %v864, %v1102
        %v1113 = vmul.f32 %v865, %v1101
        %v1114 = vmul.f32 %v866, %v1102
        %v1115 = vmul.f32 %v867, %v1101
        %v1116 = vmul.f32 %v868, %v1102
        %v1117 = vmul.f32 %v869, %v1101
        %v1118 = vmul.f32 %v870, %v1102
        %v1119 = vmul.f32 %v871, %v1101
        %v1120 = vmul.f32 %v872, %v1102
        %v1121 = vmul.f32 %v873, %v1101
        %v1122 = vmul.f32 %v874, %v1102
        %v1123 = vmul.f32 %v875, %v1101
        %v1124 = vmul.f32 %v876, %v1102
        %v1125 = vmul.f32 %v877, %v1101
        %v1126 = vmul.f32 %v878, %v1102
        %v1127 = vmul.f32 %v879, %v1101
        %v1128 = vmul.f32 %v880, %v1102
        %v1129 = vmul.f32 %v881, %v1101
        %v1130 = vmul.f32 %v882, %v1102
        %v1131 = vmul.f32 %v883, %v1101
        %v1132 = vmul.f32 %v884, %v1102
        %v1133 = vmul.f32 %v885, %v1101
        %v1134 = vmul.f32 %v886, %v1102
        %v1135 = vmul.f32 %v887, %v1101
        %v1136 = vmul.f32 %v888, %v1102
        %v1137 = vmul.f32 %v889, %v1103
        %v1138 = vmul.f32 %v890, %v1104
        %v1139 = vmul.f32 %v891, %v1103
        %v1140 = vmul.f32 %v892, %v1104
        %v1141 = vmul.f32 %v893, %v1103
        %v1142 = vmul.f32 %v894, %v1104
        %v1143 = vmul.f32 %v895, %v1103
        %v1144 = vmul.f32 %v896, %v1104
        %v1145 = vmul.f32 %v897, %v1103
        %v1146 = vmul.f32 %v898, %v1104
        %v1147 = vmul.f32 %v899, %v1103
        %v1148 = vmul.f32 %v900, %v1104
        %v1149 = vmul.f32 %v901, %v1103
        %v1150 = vmul.f32 %v902, %v1104
        %v1151 = vmul.f32 %v903, %v1103
        %v1152 = vmul.f32 %v904, %v1104
        %v1153 = vmul.f32 %v905, %v1103
        %v1154 = vmul.f32 %v906, %v1104
        %v1155 = vmul.f32 %v907, %v1103
        %v1156 = vmul.f32 %v908, %v1104
        %v1157 = vmul.f32 %v909, %v1103
        %v1158 = vmul.f32 %v910, %v1104
        %v1159 = vmul.f32 %v911, %v1103
        %v1160 = vmul.f32 %v912, %v1104
        %v1161 = vmul.f32 %v913, %v1103
        %v1162 = vmul.f32 %v914, %v1104
        %v1163 = vmul.f32 %v915, %v1103
        %v1164 = vmul.f32 %v916, %v1104
        %v1165 = vmul.f32 %v917, %v1103
        %v1166 = vmul.f32 %v918, %v1104
        %v1167 = vmul.f32 %v919, %v1103
        %v1168 = vmul.f32 %v920, %v1104
        %v1169 = vpack.c.bf16 %v1107, %v1105
        %v1170 = vpack.c.bf16 %v1108, %v1106
        %v1171 = vpack.c.bf16 %v1111, %v1109
        %v1172 = vpack.c.bf16 %v1112, %v1110
        %v1173 = vpack.c.bf16 %v1115, %v1113
        %v1174 = vpack.c.bf16 %v1116, %v1114
        %v1175 = vpack.c.bf16 %v1119, %v1117
        %v1176 = vpack.c.bf16 %v1120, %v1118
        %v1177 = vpack.c.bf16 %v1123, %v1121
        %v1178 = vpack.c.bf16 %v1124, %v1122
        %v1179 = vpack.c.bf16 %v1127, %v1125
        %v1180 = vpack.c.bf16 %v1128, %v1126
        %v1181 = vpack.c.bf16 %v1131, %v1129
        %v1182 = vpack.c.bf16 %v1132, %v1130
        %v1183 = vpack.c.bf16 %v1135, %v1133
        %v1184 = vpack.c.bf16 %v1136, %v1134
        %v1185 = vpack.c.bf16 %v1139, %v1137
        %v1186 = vpack.c.bf16 %v1140, %v1138
        %v1187 = vpack.c.bf16 %v1143, %v1141
        %v1188 = vpack.c.bf16 %v1144, %v1142
        %v1189 = vpack.c.bf16 %v1147, %v1145
        %v1190 = vpack.c.bf16 %v1148, %v1146
        %v1191 = vpack.c.bf16 %v1151, %v1149
        %v1192 = vpack.c.bf16 %v1152, %v1150
        %v1193 = vpack.c.bf16 %v1155, %v1153
        %v1194 = vpack.c.bf16 %v1156, %v1154
        %v1195 = vpack.c.bf16 %v1159, %v1157
        %v1196 = vpack.c.bf16 %v1160, %v1158
        %v1197 = vpack.c.bf16 %v1163, %v1161
        %v1198 = vpack.c.bf16 %v1164, %v1162
        %v1199 = vpack.c.bf16 %v1167, %v1165
        %v1200 = vpack.c.bf16 %v1168, %v1166
        %v1201 = vld [vmem:[#allocation2] sm:$0xff]
        %v1202 = vld [vmem:[#allocation2 + $0x8] sm:$0xff]
        %v1203 = vld [vmem:[#allocation2 + $0x10] sm:$0xff]
        %v1204 = vld [vmem:[#allocation2 + $0x18] sm:$0xff]
        %v1205 = vld [vmem:[#allocation2 + $0x20] sm:$0xff]
        %v1206 = vld [vmem:[#allocation2 + $0x28] sm:$0xff]
        %v1207 = vld [vmem:[#allocation2 + $0x30] sm:$0xff]
        %v1208 = vld [vmem:[#allocation2 + $0x38] sm:$0xff]
        %v1209 = vld [vmem:[#allocation2 + $0x40] sm:$0xff]
        %v1210 = vld [vmem:[#allocation2 + $0x48] sm:$0xff]
        %v1211 = vld [vmem:[#allocation2 + $0x50] sm:$0xff]
        %v1212 = vld [vmem:[#allocation2 + $0x58] sm:$0xff]
        %v1213 = vld [vmem:[#allocation2 + $0x60] sm:$0xff]
        %v1214 = vld [vmem:[#allocation2 + $0x68] sm:$0xff]
        %v1215 = vld [vmem:[#allocation2 + $0x70] sm:$0xff]
        %v1216 = vld [vmem:[#allocation2 + $0x78] sm:$0xff]
        %1217 = vxpose.xlu0.c.b16.start [1/8] %v1201, 128
        %1218 = vxpose.xlu0.c.b16.cont [2/8] %v1203, 128
        %1219 = vxpose.xlu0.c.b16.cont [3/8] %v1205, 128
        %1220 = vxpose.xlu0.c.b16.cont [4/8] %v1207, 128
        %1221 = vxpose.xlu0.c.b16.cont [5/8] %v1209, 128
        %1222 = vxpose.xlu0.c.b16.cont [6/8] %v1211, 128
        %1223 = vxpose.xlu0.c.b16.cont [7/8] %v1213, 128
        %1224 = vxpose.xlu0.c.b16.end [8/8] %v1215, 128
        %v1225 = vpop.trf.xlu0
        %v1226 = vpop.trf.xlu0
        %v1227 = vpop.trf.xlu0
        %v1228 = vpop.trf.xlu0
        %v1229 = vpop.trf.xlu0
        %v1230 = vpop.trf.xlu0
        %v1231 = vpop.trf.xlu0
        %v1232 = vpop.trf.xlu0
        %1233 = vxpose.xlu0.c.b16.start [1/8] %v1202, 128
        %1234 = vxpose.xlu0.c.b16.cont [2/8] %v1204, 128
        %1235 = vxpose.xlu0.c.b16.cont [3/8] %v1206, 128
        %1236 = vxpose.xlu0.c.b16.cont [4/8] %v1208, 128
        %1237 = vxpose.xlu0.c.b16.cont [5/8] %v1210, 128
        %1238 = vxpose.xlu0.c.b16.cont [6/8] %v1212, 128
        %1239 = vxpose.xlu0.c.b16.cont [7/8] %v1214, 128
        %1240 = vxpose.xlu0.c.b16.end [8/8] %v1216, 128
        %v1241 = vpop.trf.xlu0
        %v1242 = vpop.trf.xlu0
        %v1243 = vpop.trf.xlu0
        %v1244 = vpop.trf.xlu0
        %v1245 = vpop.trf.xlu0
        %v1246 = vpop.trf.xlu0
        %v1247 = vpop.trf.xlu0
        %v1248 = vpop.trf.xlu0
        %1249 = vmatprep.subr.bf16.mxu0 %v1170
        %1250 = vmatpush1.bf16.msra.mxu0 %v1169
        %1251 = vmatprep.subr.bf16.mxu0 %v1172
        %1252 = vmatpush1.bf16.msra.mxu0 %v1171
        %1253 = vmatprep.subr.bf16.mxu0 %v1174
        %1254 = vmatpush1.bf16.msra.mxu0 %v1173
        %1255 = vmatprep.subr.bf16.mxu0 %v1176
        %1256 = vmatpush1.bf16.msra.mxu0 %v1175
        %1257 = vmatprep.subr.bf16.mxu0 %v1178
        %1258 = vmatpush1.bf16.msra.mxu0 %v1177
        %1259 = vmatprep.subr.bf16.mxu0 %v1180
        %1260 = vmatpush1.bf16.msra.mxu0 %v1179
        %1261 = vmatprep.subr.bf16.mxu0 %v1182
        %1262 = vmatpush1.bf16.msra.mxu0 %v1181
        %1263 = vmatprep.subr.bf16.mxu0 %v1184
        %1264 = vmatpush1.bf16.msra.mxu0 %v1183
        %1265 = vmatprep.subr.bf16.mxu0 0
        %1266 = vmatpush1.bf16.msra.mxu0 0
        %1267 = vmatprep.subr.bf16.mxu0 0
        %1268 = vmatpush1.bf16.msra.mxu0 0
        %1269 = vmatprep.subr.bf16.mxu0 0
        %1270 = vmatpush1.bf16.msra.mxu0 0
        %1271 = vmatprep.subr.bf16.mxu0 0
        %1272 = vmatpush1.bf16.msra.mxu0 0
        %1273 = vmatprep.subr.bf16.mxu0 0
        %1274 = vmatpush1.bf16.msra.mxu0 0
        %1275 = vmatprep.subr.bf16.mxu0 0
        %1276 = vmatpush1.bf16.msra.mxu0 0
        %1277 = vmatprep.subr.bf16.mxu0 0
        %1278 = vmatpush1.bf16.msra.mxu0 0
        %1279 = vmatprep.subr.bf16.mxu0 0
        %1280 = vmatpush1.bf16.msra.mxu0 0
        %1281 = vmatprep.mubr.bf16.mxu0 0
        %1282 = vmatmul.mubr.bf16.gmra.mrb[0].mxu0 %v1225
        %v1283 = vpop.f32.mrb[0].mxu0
        %v1284 = vadd.f32 0.0, %v1283
        %v1285 = vpop.f32.mrb[0].mxu0
        %v1286 = vadd.f32 0.0, %v1285
        %v1287 = vpop.f32.mrb[0].mxu0
        %v1288 = vadd.f32 0.0, %v1287
        %v1289 = vpop.f32.mrb[0].mxu0
        %v1290 = vadd.f32 0.0, %v1289
        %1291 = vmatprep.mubr.bf16.mxu0 0
        %1292 = vmatmul.mubr.bf16.gmra.mrb[0].mxu0 %v1226
        %v1293 = vpop.f32.mrb[0].mxu0
        %v1294 = vadd.f32 0.0, %v1293
        %v1295 = vpop.f32.mrb[0].mxu0
        %v1296 = vadd.f32 0.0, %v1295
        %v1297 = vpop.f32.mrb[0].mxu0
        %v1298 = vadd.f32 0.0, %v1297
        %v1299 = vpop.f32.mrb[0].mxu0
        %v1300 = vadd.f32 0.0, %v1299
        %1301 = vmatprep.mubr.bf16.mxu0 0
        %1302 = vmatmul.mubr.bf16.gmra.mrb[0].mxu0 %v1227
        %v1303 = vpop.f32.mrb[0].mxu0
        %v1304 = vadd.f32 0.0, %v1303
        %v1305 = vpop.f32.mrb[0].mxu0
        %v1306 = vadd.f32 0.0, %v1305
        %v1307 = vpop.f32.mrb[0].mxu0
        %v1308 = vadd.f32 0.0, %v1307
        %v1309 = vpop.f32.mrb[0].mxu0
        %v1310 = vadd.f32 0.0, %v1309
        %1311 = vmatprep.mubr.bf16.mxu0 0
        %1312 = vmatmul.mubr.bf16.gmra.mrb[0].mxu0 %v1228
        %v1313 = vpop.f32.mrb[0].mxu0
        %v1314 = vadd.f32 0.0, %v1313
        %v1315 = vpop.f32.mrb[0].mxu0
        %v1316 = vadd.f32 0.0, %v1315
        %v1317 = vpop.f32.mrb[0].mxu0
        %v1318 = vadd.f32 0.0, %v1317
        %v1319 = vpop.f32.mrb[0].mxu0
        %v1320 = vadd.f32 0.0, %v1319
        %1321 = vmatprep.mubr.bf16.mxu0 0
        %1322 = vmatmul.mubr.bf16.gmra.mrb[0].mxu0 %v1229
        %v1323 = vpop.f32.mrb[0].mxu0
        %v1324 = vadd.f32 0.0, %v1323
        %v1325 = vpop.f32.mrb[0].mxu0
        %v1326 = vadd.f32 0.0, %v1325
        %v1327 = vpop.f32.mrb[0].mxu0
        %v1328 = vadd.f32 0.0, %v1327
        %v1329 = vpop.f32.mrb[0].mxu0
        %v1330 = vadd.f32 0.0, %v1329
        %1331 = vmatprep.mubr.bf16.mxu0 0
        %1332 = vmatmul.mubr.bf16.gmra.mrb[0].mxu0 %v1230
        %v1333 = vpop.f32.mrb[0].mxu0
        %v1334 = vadd.f32 0.0, %v1333
        %v1335 = vpop.f32.mrb[0].mxu0
        %v1336 = vadd.f32 0.0, %v1335
        %v1337 = vpop.f32.mrb[0].mxu0
        %v1338 = vadd.f32 0.0, %v1337
        %v1339 = vpop.f32.mrb[0].mxu0
        %v1340 = vadd.f32 0.0, %v1339
        %1341 = vmatprep.mubr.bf16.mxu0 0
        %1342 = vmatmul.mubr.bf16.gmra.mrb[0].mxu0 %v1231
        %v1343 = vpop.f32.mrb[0].mxu0
        %v1344 = vadd.f32 0.0, %v1343
        %v1345 = vpop.f32.mrb[0].mxu0
        %v1346 = vadd.f32 0.0, %v1345
        %v1347 = vpop.f32.mrb[0].mxu0
        %v1348 = vadd.f32 0.0, %v1347
        %v1349 = vpop.f32.mrb[0].mxu0
        %v1350 = vadd.f32 0.0, %v1349
        %1351 = vmatprep.mubr.bf16.mxu0 0
        %1352 = vmatmul.mubr.bf16.gmra.mrb[0].mxu0 %v1232
        %v1353 = vpop.f32.mrb[0].mxu0
        %v1354 = vadd.f32 0.0, %v1353
        %v1355 = vpop.f32.mrb[0].mxu0
        %v1356 = vadd.f32 0.0, %v1355
        %v1357 = vpop.f32.mrb[0].mxu0
        %v1358 = vadd.f32 0.0, %v1357
        %v1359 = vpop.f32.mrb[0].mxu0
        %v1360 = vadd.f32 0.0, %v1359
        %1361 = vmatprep.mubr.bf16.mxu0 0
        %1362 = vmatmul.mubr.bf16.gmra.mrb[0].mxu0 %v1241
        %v1363 = vpop.f32.mrb[0].mxu0
        %v1364 = vadd.f32 0.0, %v1363
        %v1365 = vpop.f32.mrb[0].mxu0
        %v1366 = vadd.f32 0.0, %v1365
        %v1367 = vpop.f32.mrb[0].mxu0
        %v1368 = vadd.f32 0.0, %v1367
        %v1369 = vpop.f32.mrb[0].mxu0
        %v1370 = vadd.f32 0.0, %v1369
        %1371 = vmatprep.mubr.bf16.mxu0 0
        %1372 = vmatmul.mubr.bf16.gmra.mrb[0].mxu0 %v1242
        %v1373 = vpop.f32.mrb[0].mxu0
        %v1374 = vadd.f32 0.0, %v1373
        %v1375 = vpop.f32.mrb[0].mxu0
        %v1376 = vadd.f32 0.0, %v1375
        %v1377 = vpop.f32.mrb[0].mxu0
        %v1378 = vadd.f32 0.0, %v1377
        %v1379 = vpop.f32.mrb[0].mxu0
        %v1380 = vadd.f32 0.0, %v1379
        %1381 = vmatprep.mubr.bf16.mxu0 0
        %1382 = vmatmul.mubr.bf16.gmra.mrb[0].mxu0 %v1243
        %v1383 = vpop.f32.mrb[0].mxu0
        %v1384 = vadd.f32 0.0, %v1383
        %v1385 = vpop.f32.mrb[0].mxu0
        %v1386 = vadd.f32 0.0, %v1385
        %v1387 = vpop.f32.mrb[0].mxu0
        %v1388 = vadd.f32 0.0, %v1387
        %v1389 = vpop.f32.mrb[0].mxu0
        %v1390 = vadd.f32 0.0, %v1389
        %1391 = vmatprep.mubr.bf16.mxu0 0
        %1392 = vmatmul.mubr.bf16.gmra.mrb[0].mxu0 %v1244
        %v1393 = vpop.f32.mrb[0].mxu0
        %v1394 = vadd.f32 0.0, %v1393
        %v1395 = vpop.f32.mrb[0].mxu0
        %v1396 = vadd.f32 0.0, %v1395
        %v1397 = vpop.f32.mrb[0].mxu0
        %v1398 = vadd.f32 0.0, %v1397
        %v1399 = vpop.f32.mrb[0].mxu0
        %v1400 = vadd.f32 0.0, %v1399
        %1401 = vmatprep.mubr.bf16.mxu0 0
        %1402 = vmatmul.mubr.bf16.gmra.mrb[0].mxu0 %v1245
        %v1403 = vpop.f32.mrb[0].mxu0
        %v1404 = vadd.f32 0.0, %v1403
        %v1405 = vpop.f32.mrb[0].mxu0
        %v1406 = vadd.f32 0.0, %v1405
        %v1407 = vpop.f32.mrb[0].mxu0
        %v1408 = vadd.f32 0.0, %v1407
        %v1409 = vpop.f32.mrb[0].mxu0
        %v1410 = vadd.f32 0.0, %v1409
        %1411 = vmatprep.mubr.bf16.mxu0 0
        %1412 = vmatmul.mubr.bf16.gmra.mrb[0].mxu0 %v1246
        %v1413 = vpop.f32.mrb[0].mxu0
        %v1414 = vadd.f32 0.0, %v1413
        %v1415 = vpop.f32.mrb[0].mxu0
        %v1416 = vadd.f32 0.0, %v1415
        %v1417 = vpop.f32.mrb[0].mxu0
        %v1418 = vadd.f32 0.0, %v1417
        %v1419 = vpop.f32.mrb[0].mxu0
        %v1420 = vadd.f32 0.0, %v1419
        %1421 = vmatprep.mubr.bf16.mxu0 0
        %1422 = vmatmul.mubr.bf16.gmra.mrb[0].mxu0 %v1247
        %v1423 = vpop.f32.mrb[0].mxu0
        %v1424 = vadd.f32 0.0, %v1423
        %v1425 = vpop.f32.mrb[0].mxu0
        %v1426 = vadd.f32 0.0, %v1425
        %v1427 = vpop.f32.mrb[0].mxu0
        %v1428 = vadd.f32 0.0, %v1427
        %v1429 = vpop.f32.mrb[0].mxu0
        %v1430 = vadd.f32 0.0, %v1429
        %1431 = vmatprep.mubr.bf16.mxu0 0
        %1432 = vmatmul.mubr.bf16.gmra.mrb[0].mxu0 %v1248
        %v1433 = vpop.f32.mrb[0].mxu0
        %v1434 = vadd.f32 0.0, %v1433
        %v1435 = vpop.f32.mrb[0].mxu0
        %v1436 = vadd.f32 0.0, %v1435
        %v1437 = vpop.f32.mrb[0].mxu0
        %v1438 = vadd.f32 0.0, %v1437
        %v1439 = vpop.f32.mrb[0].mxu0
        %v1440 = vadd.f32 0.0, %v1439
        %1441 = vdwg.mxu0
        %v1442 = vmax.f32 %v1284, 0.0
        %v1443 = vmax.f32 %v1286, 0.0
        %v1444 = vmax.f32 %v1288, 0.0
        %v1445 = vmax.f32 %v1290, 0.0
        %v1446 = vmax.f32 %v1294, 0.0
        %v1447 = vmax.f32 %v1296, 0.0
        %v1448 = vmax.f32 %v1298, 0.0
        %v1449 = vmax.f32 %v1300, 0.0
        %v1450 = vmax.f32 %v1304, 0.0
        %v1451 = vmax.f32 %v1306, 0.0
        %v1452 = vmax.f32 %v1308, 0.0
        %v1453 = vmax.f32 %v1310, 0.0
        %v1454 = vmax.f32 %v1314, 0.0
        %v1455 = vmax.f32 %v1316, 0.0
        %v1456 = vmax.f32 %v1318, 0.0
        %v1457 = vmax.f32 %v1320, 0.0
        %v1458 = vmax.f32 %v1324, 0.0
        %v1459 = vmax.f32 %v1326, 0.0
        %v1460 = vmax.f32 %v1328, 0.0
        %v1461 = vmax.f32 %v1330, 0.0
        %v1462 = vmax.f32 %v1334, 0.0
        %v1463 = vmax.f32 %v1336, 0.0
        %v1464 = vmax.f32 %v1338, 0.0
        %v1465 = vmax.f32 %v1340, 0.0
        %v1466 = vmax.f32 %v1344, 0.0
        %v1467 = vmax.f32 %v1346, 0.0
        %v1468 = vmax.f32 %v1348, 0.0
        %v1469 = vmax.f32 %v1350, 0.0
        %v1470 = vmax.f32 %v1354, 0.0
        %v1471 = vmax.f32 %v1356, 0.0
        %v1472 = vmax.f32 %v1358, 0.0
        %v1473 = vmax.f32 %v1360, 0.0
        %v1474 = vmax.f32 %v1364, 0.0
        %v1475 = vmax.f32 %v1366, 0.0
        %v1476 = vmax.f32 %v1368, 0.0
        %v1477 = vmax.f32 %v1370, 0.0
        %v1478 = vmax.f32 %v1374, 0.0
        %v1479 = vmax.f32 %v1376, 0.0
        %v1480 = vmax.f32 %v1378, 0.0
        %v1481 = vmax.f32 %v1380, 0.0
        %v1482 = vmax.f32 %v1384, 0.0
        %v1483 = vmax.f32 %v1386, 0.0
        %v1484 = vmax.f32 %v1388, 0.0
        %v1485 = vmax.f32 %v1390, 0.0
        %v1486 = vmax.f32 %v1394, 0.0
        %v1487 = vmax.f32 %v1396, 0.0
        %v1488 = vmax.f32 %v1398, 0.0
        %v1489 = vmax.f32 %v1400, 0.0
        %v1490 = vmax.f32 %v1404, 0.0
        %v1491 = vmax.f32 %v1406, 0.0
        %v1492 = vmax.f32 %v1408, 0.0
        %v1493 = vmax.f32 %v1410, 0.0
        %v1494 = vmax.f32 %v1414, 0.0
        %v1495 = vmax.f32 %v1416, 0.0
        %v1496 = vmax.f32 %v1418, 0.0
        %v1497 = vmax.f32 %v1420, 0.0
        %v1498 = vmax.f32 %v1424, 0.0
        %v1499 = vmax.f32 %v1426, 0.0
        %v1500 = vmax.f32 %v1428, 0.0
        %v1501 = vmax.f32 %v1430, 0.0
        %v1502 = vmax.f32 %v1434, 0.0
        %v1503 = vmax.f32 %v1436, 0.0
        %v1504 = vmax.f32 %v1438, 0.0
        %v1505 = vmax.f32 %v1440, 0.0
        %v1506 = vpack.c.bf16 %v1444, %v1442
        %v1507 = vpack.c.bf16 %v1445, %v1443
        %v1508 = vpack.c.bf16 %v1448, %v1446
        %v1509 = vpack.c.bf16 %v1449, %v1447
        %v1510 = vpack.c.bf16 %v1452, %v1450
        %v1511 = vpack.c.bf16 %v1453, %v1451
        %v1512 = vpack.c.bf16 %v1456, %v1454
        %v1513 = vpack.c.bf16 %v1457, %v1455
        %v1514 = vpack.c.bf16 %v1460, %v1458
        %v1515 = vpack.c.bf16 %v1461, %v1459
        %v1516 = vpack.c.bf16 %v1464, %v1462
        %v1517 = vpack.c.bf16 %v1465, %v1463
        %v1518 = vpack.c.bf16 %v1468, %v1466
        %v1519 = vpack.c.bf16 %v1469, %v1467
        %v1520 = vpack.c.bf16 %v1472, %v1470
        %v1521 = vpack.c.bf16 %v1473, %v1471
        %v1522 = vpack.c.bf16 %v1476, %v1474
        %v1523 = vpack.c.bf16 %v1477, %v1475
        %v1524 = vpack.c.bf16 %v1480, %v1478
        %v1525 = vpack.c.bf16 %v1481, %v1479
        %v1526 = vpack.c.bf16 %v1484, %v1482
        %v1527 = vpack.c.bf16 %v1485, %v1483
        %v1528 = vpack.c.bf16 %v1488, %v1486
        %v1529 = vpack.c.bf16 %v1489, %v1487
        %v1530 = vpack.c.bf16 %v1492, %v1490
        %v1531 = vpack.c.bf16 %v1493, %v1491
        %v1532 = vpack.c.bf16 %v1496, %v1494
        %v1533 = vpack.c.bf16 %v1497, %v1495
        %v1534 = vpack.c.bf16 %v1500, %v1498
        %v1535 = vpack.c.bf16 %v1501, %v1499
        %v1536 = vpack.c.bf16 %v1504, %v1502
        %v1537 = vpack.c.bf16 %v1505, %v1503
        %v1570 = vunpack.c.l.b16 %v1506
        %v1571 = vunpack.c.l.b16 %v1507
        %v1572 = vunpack.c.h.b16 %v1506
        %v1573 = vunpack.c.h.b16 %v1507
        %v1574 = vunpack.c.l.b16 %v1508
        %v1575 = vunpack.c.l.b16 %v1509
        %v1576 = vunpack.c.h.b16 %v1508
        %v1577 = vunpack.c.h.b16 %v1509
        %v1578 = vunpack.c.l.b16 %v1510
        %v1579 = vunpack.c.l.b16 %v1511
        %v1580 = vunpack.c.h.b16 %v1510
        %v1581 = vunpack.c.h.b16 %v1511
        %v1582 = vunpack.c.l.b16 %v1512
        %v1583 = vunpack.c.l.b16 %v1513
        %v1584 = vunpack.c.h.b16 %v1512
        %v1585 = vunpack.c.h.b16 %v1513
        %v1586 = vunpack.c.l.b16 %v1514
        %v1587 = vunpack.c.l.b16 %v1515
        %v1588 = vunpack.c.h.b16 %v1514
        %v1589 = vunpack.c.h.b16 %v1515
        %v1590 = vunpack.c.l.b16 %v1516
        %v1591 = vunpack.c.l.b16 %v1517
        %v1592 = vunpack.c.h.b16 %v1516
        %v1593 = vunpack.c.h.b16 %v1517
        %v1594 = vunpack.c.l.b16 %v1518
        %v1595 = vunpack.c.l.b16 %v1519
        %v1596 = vunpack.c.h.b16 %v1518
        %v1597 = vunpack.c.h.b16 %v1519
        %v1598 = vunpack.c.l.b16 %v1520
        %v1599 = vunpack.c.l.b16 %v1521
        %v1600 = vunpack.c.h.b16 %v1520
        %v1601 = vunpack.c.h.b16 %v1521
        %v1602 = vunpack.c.l.b16 %v1522
        %v1603 = vunpack.c.l.b16 %v1523
        %v1604 = vunpack.c.h.b16 %v1522
        %v1605 = vunpack.c.h.b16 %v1523
        %v1606 = vunpack.c.l.b16 %v1524
        %v1607 = vunpack.c.l.b16 %v1525
        %v1608 = vunpack.c.h.b16 %v1524
        %v1609 = vunpack.c.h.b16 %v1525
        %v1610 = vunpack.c.l.b16 %v1526
        %v1611 = vunpack.c.l.b16 %v1527
        %v1612 = vunpack.c.h.b16 %v1526
        %v1613 = vunpack.c.h.b16 %v1527
        %v1614 = vunpack.c.l.b16 %v1528
        %v1615 = vunpack.c.l.b16 %v1529
        %v1616 = vunpack.c.h.b16 %v1528
        %v1617 = vunpack.c.h.b16 %v1529
        %v1618 = vunpack.c.l.b16 %v1530
        %v1619 = vunpack.c.l.b16 %v1531
        %v1620 = vunpack.c.h.b16 %v1530
        %v1621 = vunpack.c.h.b16 %v1531
        %v1622 = vunpack.c.l.b16 %v1532
        %v1623 = vunpack.c.l.b16 %v1533
        %v1624 = vunpack.c.h.b16 %v1532
        %v1625 = vunpack.c.h.b16 %v1533
        %v1626 = vunpack.c.l.b16 %v1534
        %v1627 = vunpack.c.l.b16 %v1535
        %v1628 = vunpack.c.h.b16 %v1534
        %v1629 = vunpack.c.h.b16 %v1535
        %v1630 = vunpack.c.l.b16 %v1536
        %v1631 = vunpack.c.l.b16 %v1537
        %v1632 = vunpack.c.h.b16 %v1536
        %v1633 = vunpack.c.h.b16 %v1537
        %v1634 = vpack.c.b16 %v1571, %v1570
        %v1635 = vpack.c.b16 %v1573, %v1572
        %v1636 = vpack.c.b16 %v1575, %v1574
        %v1637 = vpack.c.b16 %v1577, %v1576
        %v1638 = vpack.c.b16 %v1579, %v1578
        %v1639 = vpack.c.b16 %v1581, %v1580
        %v1640 = vpack.c.b16 %v1583, %v1582
        %v1641 = vpack.c.b16 %v1585, %v1584
        %v1642 = vpack.c.b16 %v1587, %v1586
        %v1643 = vpack.c.b16 %v1589, %v1588
        %v1644 = vpack.c.b16 %v1591, %v1590
        %v1645 = vpack.c.b16 %v1593, %v1592
        %v1646 = vpack.c.b16 %v1595, %v1594
        %v1647 = vpack.c.b16 %v1597, %v1596
        %v1648 = vpack.c.b16 %v1599, %v1598
        %v1649 = vpack.c.b16 %v1601, %v1600
        %v1650 = vpack.c.b16 %v1603, %v1602
        %v1651 = vpack.c.b16 %v1605, %v1604
        %v1652 = vpack.c.b16 %v1607, %v1606
        %v1653 = vpack.c.b16 %v1609, %v1608
        %v1654 = vpack.c.b16 %v1611, %v1610
        %v1655 = vpack.c.b16 %v1613, %v1612
        %v1656 = vpack.c.b16 %v1615, %v1614
        %v1657 = vpack.c.b16 %v1617, %v1616
        %v1658 = vpack.c.b16 %v1619, %v1618
        %v1659 = vpack.c.b16 %v1621, %v1620
        %v1660 = vpack.c.b16 %v1623, %v1622
        %v1661 = vpack.c.b16 %v1625, %v1624
        %v1662 = vpack.c.b16 %v1627, %v1626
        %v1663 = vpack.c.b16 %v1629, %v1628
        %v1664 = vpack.c.b16 %v1631, %v1630
        %v1665 = vpack.c.b16 %v1633, %v1632
        %1698 = vst [vmem:[%s305] sm:$0xff] %v1634
        %1699 = vst [vmem:[%s305 + $0x8] sm:$0xff] %v1635
        %1700 = vst [vmem:[%s305 + $0x10] sm:$0xff] %v1636
        %1701 = vst [vmem:[%s305 + $0x18] sm:$0xff] %v1637
        %1702 = vst [vmem:[%s305 + $0x20] sm:$0xff] %v1638
        %1703 = vst [vmem:[%s305 + $0x28] sm:$0xff] %v1639
        %1704 = vst [vmem:[%s305 + $0x30] sm:$0xff] %v1640
        %1705 = vst [vmem:[%s305 + $0x38] sm:$0xff] %v1641
        %1706 = vst [vmem:[%s305 + $0x40] sm:$0xff] %v1642
        %1707 = vst [vmem:[%s305 + $0x48] sm:$0xff] %v1643
        %1708 = vst [vmem:[%s305 + $0x50] sm:$0xff] %v1644
        %1709 = vst [vmem:[%s305 + $0x58] sm:$0xff] %v1645
        %1710 = vst [vmem:[%s305 + $0x60] sm:$0xff] %v1646
        %1711 = vst [vmem:[%s305 + $0x68] sm:$0xff] %v1647
        %1712 = vst [vmem:[%s305 + $0x70] sm:$0xff] %v1648
        %1713 = vst [vmem:[%s305 + $0x78] sm:$0xff] %v1649
        %1714 = vst [vmem:[%s305 + $0x80] sm:$0xff] %v1650
        %1715 = vst [vmem:[%s305 + $0x88] sm:$0xff] %v1651
        %1716 = vst [vmem:[%s305 + $0x90] sm:$0xff] %v1652
        %1717 = vst [vmem:[%s305 + $0x98] sm:$0xff] %v1653
        %1718 = vst [vmem:[%s305 + $0xa0] sm:$0xff] %v1654
        %1719 = vst [vmem:[%s305 + $0xa8] sm:$0xff] %v1655
        %1720 = vst [vmem:[%s305 + $0xb0] sm:$0xff] %v1656
        %1721 = vst [vmem:[%s305 + $0xb8] sm:$0xff] %v1657
        %1722 = vst [vmem:[%s305 + $0xc0] sm:$0xff] %v1658
        %1723 = vst [vmem:[%s305 + $0xc8] sm:$0xff] %v1659
        %1724 = vst [vmem:[%s305 + $0xd0] sm:$0xff] %v1660
        %1725 = vst [vmem:[%s305 + $0xd8] sm:$0xff] %v1661
        %1726 = vst [vmem:[%s305 + $0xe0] sm:$0xff] %v1662
        %1727 = vst [vmem:[%s305 + $0xe8] sm:$0xff] %v1663
        %1728 = vst [vmem:[%s305 + $0xf0] sm:$0xff] %v1664
        %1729 = vst [vmem:[%s305 + $0xf8] sm:$0xff] %v1665
        %s1730 = scalar_lea.vmem [#allocation2], 128
        %v1731 = vld [vmem:[%s1730] sm:$0xff]
        %v1732 = vld [vmem:[%s1730 + $0x8] sm:$0xff]
        %v1733 = vld [vmem:[%s1730 + $0x10] sm:$0xff]
        %v1734 = vld [vmem:[%s1730 + $0x18] sm:$0xff]
        %v1735 = vld [vmem:[%s1730 + $0x20] sm:$0xff]
        %v1736 = vld [vmem:[%s1730 + $0x28] sm:$0xff]
        %v1737 = vld [vmem:[%s1730 + $0x30] sm:$0xff]
        %v1738 = vld [vmem:[%s1730 + $0x38] sm:$0xff]
        %v1739 = vld [vmem:[%s1730 + $0x40] sm:$0xff]
        %v1740 = vld [vmem:[%s1730 + $0x48] sm:$0xff]
        %v1741 = vld [vmem:[%s1730 + $0x50] sm:$0xff]
        %v1742 = vld [vmem:[%s1730 + $0x58] sm:$0xff]
        %v1743 = vld [vmem:[%s1730 + $0x60] sm:$0xff]
        %v1744 = vld [vmem:[%s1730 + $0x68] sm:$0xff]
        %v1745 = vld [vmem:[%s1730 + $0x70] sm:$0xff]
        %v1746 = vld [vmem:[%s1730 + $0x78] sm:$0xff]
        %1747 = vxpose.xlu0.c.b16.start [1/8] %v1731, 128
        %1748 = vxpose.xlu0.c.b16.cont [2/8] %v1733, 128
        %1749 = vxpose.xlu0.c.b16.cont [3/8] %v1735, 128
        %1750 = vxpose.xlu0.c.b16.cont [4/8] %v1737, 128
        %1751 = vxpose.xlu0.c.b16.cont [5/8] %v1739, 128
        %1752 = vxpose.xlu0.c.b16.cont [6/8] %v1741, 128
        %1753 = vxpose.xlu0.c.b16.cont [7/8] %v1743, 128
        %1754 = vxpose.xlu0.c.b16.end [8/8] %v1745, 128
        %v1755 = vpop.trf.xlu0
        %v1756 = vpop.trf.xlu0
        %v1757 = vpop.trf.xlu0
        %v1758 = vpop.trf.xlu0
        %v1759 = vpop.trf.xlu0
        %v1760 = vpop.trf.xlu0
        %v1761 = vpop.trf.xlu0
        %v1762 = vpop.trf.xlu0
        %1763 = vxpose.xlu0.c.b16.start [1/8] %v1732, 128
        %1764 = vxpose.xlu0.c.b16.cont [2/8] %v1734, 128
        %1765 = vxpose.xlu0.c.b16.cont [3/8] %v1736, 128
        %1766 = vxpose.xlu0.c.b16.cont [4/8] %v1738, 128
        %1767 = vxpose.xlu0.c.b16.cont [5/8] %v1740, 128
        %1768 = vxpose.xlu0.c.b16.cont [6/8] %v1742, 128
        %1769 = vxpose.xlu0.c.b16.cont [7/8] %v1744, 128
        %1770 = vxpose.xlu0.c.b16.end [8/8] %v1746, 128
        %v1771 = vpop.trf.xlu0
        %v1772 = vpop.trf.xlu0
        %v1773 = vpop.trf.xlu0
        %v1774 = vpop.trf.xlu0
        %v1775 = vpop.trf.xlu0
        %v1776 = vpop.trf.xlu0
        %v1777 = vpop.trf.xlu0
        %v1778 = vpop.trf.xlu0
        %1779 = vmatprep.subr.bf16.mxu0 %v1186
        %1780 = vmatpush1.bf16.msra.mxu0 %v1185
        %1781 = vmatprep.subr.bf16.mxu0 %v1188
        %1782 = vmatpush1.bf16.msra.mxu0 %v1187
        %1783 = vmatprep.subr.bf16.mxu0 %v1190
        %1784 = vmatpush1.bf16.msra.mxu0 %v1189
        %1785 = vmatprep.subr.bf16.mxu0 %v1192
        %1786 = vmatpush1.bf16.msra.mxu0 %v1191
        %1787 = vmatprep.subr.bf16.mxu0 %v1194
        %1788 = vmatpush1.bf16.msra.mxu0 %v1193
        %1789 = vmatprep.subr.bf16.mxu0 %v1196
        %1790 = vmatpush1.bf16.msra.mxu0 %v1195
        %1791 = vmatprep.subr.bf16.mxu0 %v1198
        %1792 = vmatpush1.bf16.msra.mxu0 %v1197
        %1793 = vmatprep.subr.bf16.mxu0 %v1200
        %1794 = vmatpush1.bf16.msra.mxu0 %v1199
        %1795 = vmatprep.subr.bf16.mxu0 0
        %1796 = vmatpush1.bf16.msra.mxu0 0
        %1797 = vmatprep.subr.bf16.mxu0 0
        %1798 = vmatpush1.bf16.msra.mxu0 0
        %1799 = vmatprep.subr.bf16.mxu0 0
        %1800 = vmatpush1.bf16.msra.mxu0 0
        %1801 = vmatprep.subr.bf16.mxu0 0
        %1802 = vmatpush1.bf16.msra.mxu0 0
        %1803 = vmatprep.subr.bf16.mxu0 0
        %1804 = vmatpush1.bf16.msra.mxu0 0
        %1805 = vmatprep.subr.bf16.mxu0 0
        %1806 = vmatpush1.bf16.msra.mxu0 0
        %1807 = vmatprep.subr.bf16.mxu0 0
        %1808 = vmatpush1.bf16.msra.mxu0 0
        %1809 = vmatprep.subr.bf16.mxu0 0
        %1810 = vmatpush1.bf16.msra.mxu0 0
        %1811 = vmatprep.mubr.bf16.mxu0 0
        %1812 = vmatmul.mubr.bf16.gmra.mrb[0].mxu0 %v1755
        %v1813 = vpop.f32.mrb[0].mxu0
        %v1814 = vadd.f32 0.0, %v1813
        %v1815 = vpop.f32.mrb[0].mxu0
        %v1816 = vadd.f32 0.0, %v1815
        %v1817 = vpop.f32.mrb[0].mxu0
        %v1818 = vadd.f32 0.0, %v1817
        %v1819 = vpop.f32.mrb[0].mxu0
        %v1820 = vadd.f32 0.0, %v1819
        %1821 = vmatprep.mubr.bf16.mxu0 0
        %1822 = vmatmul.mubr.bf16.gmra.mrb[0].mxu0 %v1756
        %v1823 = vpop.f32.mrb[0].mxu0
        %v1824 = vadd.f32 0.0, %v1823
        %v1825 = vpop.f32.mrb[0].mxu0
        %v1826 = vadd.f32 0.0, %v1825
        %v1827 = vpop.f32.mrb[0].mxu0
        %v1828 = vadd.f32 0.0, %v1827
        %v1829 = vpop.f32.mrb[0].mxu0
        %v1830 = vadd.f32 0.0, %v1829
        %1831 = vmatprep.mubr.bf16.mxu0 0
        %1832 = vmatmul.mubr.bf16.gmra.mrb[0].mxu0 %v1757
        %v1833 = vpop.f32.mrb[0].mxu0
        %v1834 = vadd.f32 0.0, %v1833
        %v1835 = vpop.f32.mrb[0].mxu0
        %v1836 = vadd.f32 0.0, %v1835
        %v1837 = vpop.f32.mrb[0].mxu0
        %v1838 = vadd.f32 0.0, %v1837
        %v1839 = vpop.f32.mrb[0].mxu0
        %v1840 = vadd.f32 0.0, %v1839
        %1841 = vmatprep.mubr.bf16.mxu0 0
        %1842 = vmatmul.mubr.bf16.gmra.mrb[0].mxu0 %v1758
        %v1843 = vpop.f32.mrb[0].mxu0
        %v1844 = vadd.f32 0.0, %v1843
        %v1845 = vpop.f32.mrb[0].mxu0
        %v1846 = vadd.f32 0.0, %v1845
        %v1847 = vpop.f32.mrb[0].mxu0
        %v1848 = vadd.f32 0.0, %v1847
        %v1849 = vpop.f32.mrb[0].mxu0
        %v1850 = vadd.f32 0.0, %v1849
        %1851 = vmatprep.mubr.bf16.mxu0 0
        %1852 = vmatmul.mubr.bf16.gmra.mrb[0].mxu0 %v1759
        %v1853 = vpop.f32.mrb[0].mxu0
        %v1854 = vadd.f32 0.0, %v1853
        %v1855 = vpop.f32.mrb[0].mxu0
        %v1856 = vadd.f32 0.0, %v1855
        %v1857 = vpop.f32.mrb[0].mxu0
        %v1858 = vadd.f32 0.0, %v1857
        %v1859 = vpop.f32.mrb[0].mxu0
        %v1860 = vadd.f32 0.0, %v1859
        %1861 = vmatprep.mubr.bf16.mxu0 0
        %1862 = vmatmul.mubr.bf16.gmra.mrb[0].mxu0 %v1760
        %v1863 = vpop.f32.mrb[0].mxu0
        %v1864 = vadd.f32 0.0, %v1863
        %v1865 = vpop.f32.mrb[0].mxu0
        %v1866 = vadd.f32 0.0, %v1865
        %v1867 = vpop.f32.mrb[0].mxu0
        %v1868 = vadd.f32 0.0, %v1867
        %v1869 = vpop.f32.mrb[0].mxu0
        %v1870 = vadd.f32 0.0, %v1869
        %1871 = vmatprep.mubr.bf16.mxu0 0
        %1872 = vmatmul.mubr.bf16.gmra.mrb[0].mxu0 %v1761
        %v1873 = vpop.f32.mrb[0].mxu0
        %v1874 = vadd.f32 0.0, %v1873
        %v1875 = vpop.f32.mrb[0].mxu0
        %v1876 = vadd.f32 0.0, %v1875
        %v1877 = vpop.f32.mrb[0].mxu0
        %v1878 = vadd.f32 0.0, %v1877
        %v1879 = vpop.f32.mrb[0].mxu0
        %v1880 = vadd.f32 0.0, %v1879
        %1881 = vmatprep.mubr.bf16.mxu0 0
        %1882 = vmatmul.mubr.bf16.gmra.mrb[0].mxu0 %v1762
        %v1883 = vpop.f32.mrb[0].mxu0
        %v1884 = vadd.f32 0.0, %v1883
        %v1885 = vpop.f32.mrb[0].mxu0
        %v1886 = vadd.f32 0.0, %v1885
        %v1887 = vpop.f32.mrb[0].mxu0
        %v1888 = vadd.f32 0.0, %v1887
        %v1889 = vpop.f32.mrb[0].mxu0
        %v1890 = vadd.f32 0.0, %v1889
        %1891 = vmatprep.mubr.bf16.mxu0 0
        %1892 = vmatmul.mubr.bf16.gmra.mrb[0].mxu0 %v1771
        %v1893 = vpop.f32.mrb[0].mxu0
        %v1894 = vadd.f32 0.0, %v1893
        %v1895 = vpop.f32.mrb[0].mxu0
        %v1896 = vadd.f32 0.0, %v1895
        %v1897 = vpop.f32.mrb[0].mxu0
        %v1898 = vadd.f32 0.0, %v1897
        %v1899 = vpop.f32.mrb[0].mxu0
        %v1900 = vadd.f32 0.0, %v1899
        %1901 = vmatprep.mubr.bf16.mxu0 0
        %1902 = vmatmul.mubr.bf16.gmra.mrb[0].mxu0 %v1772
        %v1903 = vpop.f32.mrb[0].mxu0
        %v1904 = vadd.f32 0.0, %v1903
        %v1905 = vpop.f32.mrb[0].mxu0
        %v1906 = vadd.f32 0.0, %v1905
        %v1907 = vpop.f32.mrb[0].mxu0
        %v1908 = vadd.f32 0.0, %v1907
        %v1909 = vpop.f32.mrb[0].mxu0
        %v1910 = vadd.f32 0.0, %v1909
        %1911 = vmatprep.mubr.bf16.mxu0 0
        %1912 = vmatmul.mubr.bf16.gmra.mrb[0].mxu0 %v1773
        %v1913 = vpop.f32.mrb[0].mxu0
        %v1914 = vadd.f32 0.0, %v1913
        %v1915 = vpop.f32.mrb[0].mxu0
        %v1916 = vadd.f32 0.0, %v1915
        %v1917 = vpop.f32.mrb[0].mxu0
        %v1918 = vadd.f32 0.0, %v1917
        %v1919 = vpop.f32.mrb[0].mxu0
        %v1920 = vadd.f32 0.0, %v1919
        %1921 = vmatprep.mubr.bf16.mxu0 0
        %1922 = vmatmul.mubr.bf16.gmra.mrb[0].mxu0 %v1774
        %v1923 = vpop.f32.mrb[0].mxu0
        %v1924 = vadd.f32 0.0, %v1923
        %v1925 = vpop.f32.mrb[0].mxu0
        %v1926 = vadd.f32 0.0, %v1925
        %v1927 = vpop.f32.mrb[0].mxu0
        %v1928 = vadd.f32 0.0, %v1927
        %v1929 = vpop.f32.mrb[0].mxu0
        %v1930 = vadd.f32 0.0, %v1929
        %1931 = vmatprep.mubr.bf16.mxu0 0
        %1932 = vmatmul.mubr.bf16.gmra.mrb[0].mxu0 %v1775
        %v1933 = vpop.f32.mrb[0].mxu0
        %v1934 = vadd.f32 0.0, %v1933
        %v1935 = vpop.f32.mrb[0].mxu0
        %v1936 = vadd.f32 0.0, %v1935
        %v1937 = vpop.f32.mrb[0].mxu0
        %v1938 = vadd.f32 0.0, %v1937
        %v1939 = vpop.f32.mrb[0].mxu0
        %v1940 = vadd.f32 0.0, %v1939
        %1941 = vmatprep.mubr.bf16.mxu0 0
        %1942 = vmatmul.mubr.bf16.gmra.mrb[0].mxu0 %v1776
        %v1943 = vpop.f32.mrb[0].mxu0
        %v1944 = vadd.f32 0.0, %v1943
        %v1945 = vpop.f32.mrb[0].mxu0
        %v1946 = vadd.f32 0.0, %v1945
        %v1947 = vpop.f32.mrb[0].mxu0
        %v1948 = vadd.f32 0.0, %v1947
        %v1949 = vpop.f32.mrb[0].mxu0
        %v1950 = vadd.f32 0.0, %v1949
        %1951 = vmatprep.mubr.bf16.mxu0 0
        %1952 = vmatmul.mubr.bf16.gmra.mrb[0].mxu0 %v1777
        %v1953 = vpop.f32.mrb[0].mxu0
        %v1954 = vadd.f32 0.0, %v1953
        %v1955 = vpop.f32.mrb[0].mxu0
        %v1956 = vadd.f32 0.0, %v1955
        %v1957 = vpop.f32.mrb[0].mxu0
        %v1958 = vadd.f32 0.0, %v1957
        %v1959 = vpop.f32.mrb[0].mxu0
        %v1960 = vadd.f32 0.0, %v1959
        %1961 = vmatprep.mubr.bf16.mxu0 0
        %1962 = vmatmul.mubr.bf16.gmra.mrb[0].mxu0 %v1778
        %v1963 = vpop.f32.mrb[0].mxu0
        %v1964 = vadd.f32 0.0, %v1963
        %v1965 = vpop.f32.mrb[0].mxu0
        %v1966 = vadd.f32 0.0, %v1965
        %v1967 = vpop.f32.mrb[0].mxu0
        %v1968 = vadd.f32 0.0, %v1967
        %v1969 = vpop.f32.mrb[0].mxu0
        %v1970 = vadd.f32 0.0, %v1969
        %1971 = vdwg.mxu0
        %v1972 = vmax.f32 %v1814, 0.0
        %v1973 = vmax.f32 %v1816, 0.0
        %v1974 = vmax.f32 %v1818, 0.0
        %v1975 = vmax.f32 %v1820, 0.0
        %v1976 = vmax.f32 %v1824, 0.0
        %v1977 = vmax.f32 %v1826, 0.0
        %v1978 = vmax.f32 %v1828, 0.0
        %v1979 = vmax.f32 %v1830, 0.0
        %v1980 = vmax.f32 %v1834, 0.0
        %v1981 = vmax.f32 %v1836, 0.0
        %v1982 = vmax.f32 %v1838, 0.0
        %v1983 = vmax.f32 %v1840, 0.0
        %v1984 = vmax.f32 %v1844, 0.0
        %v1985 = vmax.f32 %v1846, 0.0
        %v1986 = vmax.f32 %v1848, 0.0
        %v1987 = vmax.f32 %v1850, 0.0
        %v1988 = vmax.f32 %v1854, 0.0
        %v1989 = vmax.f32 %v1856, 0.0
        %v1990 = vmax.f32 %v1858, 0.0
        %v1991 = vmax.f32 %v1860, 0.0
        %v1992 = vmax.f32 %v1864, 0.0
        %v1993 = vmax.f32 %v1866, 0.0
        %v1994 = vmax.f32 %v1868, 0.0
        %v1995 = vmax.f32 %v1870, 0.0
        %v1996 = vmax.f32 %v1874, 0.0
        %v1997 = vmax.f32 %v1876, 0.0
        %v1998 = vmax.f32 %v1878, 0.0
        %v1999 = vmax.f32 %v1880, 0.0
        %v2000 = vmax.f32 %v1884, 0.0
        %v2001 = vmax.f32 %v1886, 0.0
        %v2002 = vmax.f32 %v1888, 0.0
        %v2003 = vmax.f32 %v1890, 0.0
        %v2004 = vmax.f32 %v1894, 0.0
        %v2005 = vmax.f32 %v1896, 0.0
        %v2006 = vmax.f32 %v1898, 0.0
        %v2007 = vmax.f32 %v1900, 0.0
        %v2008 = vmax.f32 %v1904, 0.0
        %v2009 = vmax.f32 %v1906, 0.0
        %v2010 = vmax.f32 %v1908, 0.0
        %v2011 = vmax.f32 %v1910, 0.0
        %v2012 = vmax.f32 %v1914, 0.0
        %v2013 = vmax.f32 %v1916, 0.0
        %v2014 = vmax.f32 %v1918, 0.0
        %v2015 = vmax.f32 %v1920, 0.0
        %v2016 = vmax.f32 %v1924, 0.0
        %v2017 = vmax.f32 %v1926, 0.0
        %v2018 = vmax.f32 %v1928, 0.0
        %v2019 = vmax.f32 %v1930, 0.0
        %v2020 = vmax.f32 %v1934, 0.0
        %v2021 = vmax.f32 %v1936, 0.0
        %v2022 = vmax.f32 %v1938, 0.0
        %v2023 = vmax.f32 %v1940, 0.0
        %v2024 = vmax.f32 %v1944, 0.0
        %v2025 = vmax.f32 %v1946, 0.0
        %v2026 = vmax.f32 %v1948, 0.0
        %v2027 = vmax.f32 %v1950, 0.0
        %v2028 = vmax.f32 %v1954, 0.0
        %v2029 = vmax.f32 %v1956, 0.0
        %v2030 = vmax.f32 %v1958, 0.0
        %v2031 = vmax.f32 %v1960, 0.0
        %v2032 = vmax.f32 %v1964, 0.0
        %v2033 = vmax.f32 %v1966, 0.0
        %v2034 = vmax.f32 %v1968, 0.0
        %v2035 = vmax.f32 %v1970, 0.0
        %v2036 = vpack.c.bf16 %v1974, %v1972
        %v2037 = vpack.c.bf16 %v1975, %v1973
        %v2038 = vpack.c.bf16 %v1978, %v1976
        %v2039 = vpack.c.bf16 %v1979, %v1977
        %v2040 = vpack.c.bf16 %v1982, %v1980
        %v2041 = vpack.c.bf16 %v1983, %v1981
        %v2042 = vpack.c.bf16 %v1986, %v1984
        %v2043 = vpack.c.bf16 %v1987, %v1985
        %v2044 = vpack.c.bf16 %v1990, %v1988
        %v2045 = vpack.c.bf16 %v1991, %v1989
        %v2046 = vpack.c.bf16 %v1994, %v1992
        %v2047 = vpack.c.bf16 %v1995, %v1993
        %v2048 = vpack.c.bf16 %v1998, %v1996
        %v2049 = vpack.c.bf16 %v1999, %v1997
        %v2050 = vpack.c.bf16 %v2002, %v2000
        %v2051 = vpack.c.bf16 %v2003, %v2001
        %v2052 = vpack.c.bf16 %v2006, %v2004
        %v2053 = vpack.c.bf16 %v2007, %v2005
        %v2054 = vpack.c.bf16 %v2010, %v2008
        %v2055 = vpack.c.bf16 %v2011, %v2009
        %v2056 = vpack.c.bf16 %v2014, %v2012
        %v2057 = vpack.c.bf16 %v2015, %v2013
        %v2058 = vpack.c.bf16 %v2018, %v2016
        %v2059 = vpack.c.bf16 %v2019, %v2017
        %v2060 = vpack.c.bf16 %v2022, %v2020
        %v2061 = vpack.c.bf16 %v2023, %v2021
        %v2062 = vpack.c.bf16 %v2026, %v2024
        %v2063 = vpack.c.bf16 %v2027, %v2025
        %v2064 = vpack.c.bf16 %v2030, %v2028
        %v2065 = vpack.c.bf16 %v2031, %v2029
        %v2066 = vpack.c.bf16 %v2034, %v2032
        %v2067 = vpack.c.bf16 %v2035, %v2033
        %v2100 = vunpack.c.l.b16 %v2036
        %v2101 = vunpack.c.l.b16 %v2037
        %v2102 = vunpack.c.h.b16 %v2036
        %v2103 = vunpack.c.h.b16 %v2037
        %v2104 = vunpack.c.l.b16 %v2038
        %v2105 = vunpack.c.l.b16 %v2039
        %v2106 = vunpack.c.h.b16 %v2038
        %v2107 = vunpack.c.h.b16 %v2039
        %v2108 = vunpack.c.l.b16 %v2040
        %v2109 = vunpack.c.l.b16 %v2041
        %v2110 = vunpack.c.h.b16 %v2040
        %v2111 = vunpack.c.h.b16 %v2041
        %v2112 = vunpack.c.l.b16 %v2042
        %v2113 = vunpack.c.l.b16 %v2043
        %v2114 = vunpack.c.h.b16 %v2042
        %v2115 = vunpack.c.h.b16 %v2043
        %v2116 = vunpack.c.l.b16 %v2044
        %v2117 = vunpack.c.l.b16 %v2045
        %v2118 = vunpack.c.h.b16 %v2044
        %v2119 = vunpack.c.h.b16 %v2045
        %v2120 = vunpack.c.l.b16 %v2046
        %v2121 = vunpack.c.l.b16 %v2047
        %v2122 = vunpack.c.h.b16 %v2046
        %v2123 = vunpack.c.h.b16 %v2047
        %v2124 = vunpack.c.l.b16 %v2048
        %v2125 = vunpack.c.l.b16 %v2049
        %v2126 = vunpack.c.h.b16 %v2048
        %v2127 = vunpack.c.h.b16 %v2049
        %v2128 = vunpack.c.l.b16 %v2050
        %v2129 = vunpack.c.l.b16 %v2051
        %v2130 = vunpack.c.h.b16 %v2050
        %v2131 = vunpack.c.h.b16 %v2051
        %v2132 = vunpack.c.l.b16 %v2052
        %v2133 = vunpack.c.l.b16 %v2053
        %v2134 = vunpack.c.h.b16 %v2052
        %v2135 = vunpack.c.h.b16 %v2053
        %v2136 = vunpack.c.l.b16 %v2054
        %v2137 = vunpack.c.l.b16 %v2055
        %v2138 = vunpack.c.h.b16 %v2054
        %v2139 = vunpack.c.h.b16 %v2055
        %v2140 = vunpack.c.l.b16 %v2056
        %v2141 = vunpack.c.l.b16 %v2057
        %v2142 = vunpack.c.h.b16 %v2056
        %v2143 = vunpack.c.h.b16 %v2057
        %v2144 = vunpack.c.l.b16 %v2058
        %v2145 = vunpack.c.l.b16 %v2059
        %v2146 = vunpack.c.h.b16 %v2058
        %v2147 = vunpack.c.h.b16 %v2059
        %v2148 = vunpack.c.l.b16 %v2060
        %v2149 = vunpack.c.l.b16 %v2061
        %v2150 = vunpack.c.h.b16 %v2060
        %v2151 = vunpack.c.h.b16 %v2061
        %v2152 = vunpack.c.l.b16 %v2062
        %v2153 = vunpack.c.l.b16 %v2063
        %v2154 = vunpack.c.h.b16 %v2062
        %v2155 = vunpack.c.h.b16 %v2063
        %v2156 = vunpack.c.l.b16 %v2064
        %v2157 = vunpack.c.l.b16 %v2065
        %v2158 = vunpack.c.h.b16 %v2064
        %v2159 = vunpack.c.h.b16 %v2065
        %v2160 = vunpack.c.l.b16 %v2066
        %v2161 = vunpack.c.l.b16 %v2067
        %v2162 = vunpack.c.h.b16 %v2066
        %v2163 = vunpack.c.h.b16 %v2067
        %v2164 = vpack.c.b16 %v2101, %v2100
        %v2165 = vpack.c.b16 %v2103, %v2102
        %v2166 = vpack.c.b16 %v2105, %v2104
        %v2167 = vpack.c.b16 %v2107, %v2106
        %v2168 = vpack.c.b16 %v2109, %v2108
        %v2169 = vpack.c.b16 %v2111, %v2110
        %v2170 = vpack.c.b16 %v2113, %v2112
        %v2171 = vpack.c.b16 %v2115, %v2114
        %v2172 = vpack.c.b16 %v2117, %v2116
        %v2173 = vpack.c.b16 %v2119, %v2118
        %v2174 = vpack.c.b16 %v2121, %v2120
        %v2175 = vpack.c.b16 %v2123, %v2122
        %v2176 = vpack.c.b16 %v2125, %v2124
        %v2177 = vpack.c.b16 %v2127, %v2126
        %v2178 = vpack.c.b16 %v2129, %v2128
        %v2179 = vpack.c.b16 %v2131, %v2130
        %v2180 = vpack.c.b16 %v2133, %v2132
        %v2181 = vpack.c.b16 %v2135, %v2134
        %v2182 = vpack.c.b16 %v2137, %v2136
        %v2183 = vpack.c.b16 %v2139, %v2138
        %v2184 = vpack.c.b16 %v2141, %v2140
        %v2185 = vpack.c.b16 %v2143, %v2142
        %v2186 = vpack.c.b16 %v2145, %v2144
        %v2187 = vpack.c.b16 %v2147, %v2146
        %v2188 = vpack.c.b16 %v2149, %v2148
        %v2189 = vpack.c.b16 %v2151, %v2150
        %v2190 = vpack.c.b16 %v2153, %v2152
        %v2191 = vpack.c.b16 %v2155, %v2154
        %v2192 = vpack.c.b16 %v2157, %v2156
        %v2193 = vpack.c.b16 %v2159, %v2158
        %v2194 = vpack.c.b16 %v2161, %v2160
        %v2195 = vpack.c.b16 %v2163, %v2162
        %s2228 = scalar_lea.vmem %s305, 256 [#allocation8]
        %2229 = vst [vmem:[%s2228] sm:$0xff] %v2164
        %2230 = vst [vmem:[%s2228 + $0x8] sm:$0xff] %v2165
        %2231 = vst [vmem:[%s2228 + $0x10] sm:$0xff] %v2166
        %2232 = vst [vmem:[%s2228 + $0x18] sm:$0xff] %v2167
        %2233 = vst [vmem:[%s2228 + $0x20] sm:$0xff] %v2168
        %2234 = vst [vmem:[%s2228 + $0x28] sm:$0xff] %v2169
        %2235 = vst [vmem:[%s2228 + $0x30] sm:$0xff] %v2170
        %2236 = vst [vmem:[%s2228 + $0x38] sm:$0xff] %v2171
        %2237 = vst [vmem:[%s2228 + $0x40] sm:$0xff] %v2172
        %2238 = vst [vmem:[%s2228 + $0x48] sm:$0xff] %v2173
        %2239 = vst [vmem:[%s2228 + $0x50] sm:$0xff] %v2174
        %2240 = vst [vmem:[%s2228 + $0x58] sm:$0xff] %v2175
        %2241 = vst [vmem:[%s2228 + $0x60] sm:$0xff] %v2176
        %2242 = vst [vmem:[%s2228 + $0x68] sm:$0xff] %v2177
        %2243 = vst [vmem:[%s2228 + $0x70] sm:$0xff] %v2178
        %2244 = vst [vmem:[%s2228 + $0x78] sm:$0xff] %v2179
        %2245 = vst [vmem:[%s2228 + $0x80] sm:$0xff] %v2180
        %2246 = vst [vmem:[%s2228 + $0x88] sm:$0xff] %v2181
        %2247 = vst [vmem:[%s2228 + $0x90] sm:$0xff] %v2182
        %2248 = vst [vmem:[%s2228 + $0x98] sm:$0xff] %v2183
        %2249 = vst [vmem:[%s2228 + $0xa0] sm:$0xff] %v2184
        %2250 = vst [vmem:[%s2228 + $0xa8] sm:$0xff] %v2185
        %2251 = vst [vmem:[%s2228 + $0xb0] sm:$0xff] %v2186
        %2252 = vst [vmem:[%s2228 + $0xb8] sm:$0xff] %v2187
        %2253 = vst [vmem:[%s2228 + $0xc0] sm:$0xff] %v2188
        %2254 = vst [vmem:[%s2228 + $0xc8] sm:$0xff] %v2189
        %2255 = vst [vmem:[%s2228 + $0xd0] sm:$0xff] %v2190
        %2256 = vst [vmem:[%s2228 + $0xd8] sm:$0xff] %v2191
        %2257 = vst [vmem:[%s2228 + $0xe0] sm:$0xff] %v2192
        %2258 = vst [vmem:[%s2228 + $0xe8] sm:$0xff] %v2193
        %2259 = vst [vmem:[%s2228 + $0xf0] sm:$0xff] %v2194
        %2260 = vst [vmem:[%s2228 + $0xf8] sm:$0xff] %v2195
        %s2261 = sand.u32 %s151, 1
        %s2262 = scalar_lea.sflag [#allocation5], %s2261
        %s2263 = sand.u32 %s151, 1
        %s2264 = smul.addr %s2263, 512
        %s2265 = scalar_lea.vmem [#allocation8], %s2264
        // Predicated region
        $region45: #{tpu_custom_call.1} parent=31 // pred_check
          %p2266 = pneg %p161
        $region46: #{tpu_custom_call.1} parent=31 // pred_check_branch
          %2268 = sbr.rel (%p2266) target = $region48
        $region47: #{tpu_custom_call.1} parent=31 // pred_region
          #allocation10 [shape = 'u32[6]{0}', space=smem, size = 0x18, scoped, tag = 'DMA stride descriptor']
          %s2269 = smul.u32 2, %s29
          %s2270 = smul.u32 32, %s31
          %s2271 = smul.u32 2, %s32
          %s2273 = ssub.s32 8192, 8192
          %2274 = vsyncadd %s2262, %s2273
          %s2275 = smul.addr %s2270, 2
          %s2276 = sadd.s32 %s2271, %s2275
          %s2277 = smul.addr %s30, 64
          %s2278 = sadd.s32 %s2276, %s2277
          %s2279 = smul.addr %s2269, 256
          %s2280 = sadd.s32 %s2278, %s2279
          %s2281 = smul.addr %s2280, 64
          %s2282 = scalar_lea.hbm %s3, %s2281
          %s2284 = sshll.u32 1, 14
          %s2285 = sxor.u32 4294967295, %s2284
          %s2288 = sshll.u32 7, 18
          %s2289 = sxor.u32 4294967295, %s2288
          %s2290 = sand.u32 0, %s2289
          %s2292 = sor.u32 %s2290, 0
          %s2294 = sshll.u32 3, 24
          %s2295 = sxor.u32 4294967295, %s2294
          %s2296 = sand.u32 %s2292, %s2295
          %s2298 = sor.u32 %s2296, 0
          %s2299 = sshll.u32 %s2265, 4
          %s2300 = int_to_ptr.vmem [resolvable:$true] %s2299
          %2306 = sst [smem:[#allocation10]] 4096
          %s2307 = scalar_lea.smem [#allocation10], 1
          %2308 = sst [smem:[%s2307]] 16384
          %s2309 = scalar_lea.smem [#allocation10], 2
          %2310 = sst [smem:[%s2309]] 32
          %s2311 = scalar_lea.smem [#allocation10], 3
          %2312 = sst [smem:[%s2311]] 128
          %s2313 = scalar_lea.smem [#allocation10], 4
          %2314 = sst [smem:[%s2313]] 128
          %s2315 = scalar_lea.smem [#allocation10], 5
          %2316 = sst [smem:[%s2315]] 8
          %2318 = dma.general %s2300, 8192, %s2282, %s2262, [#allocation9], [#allocation10], %s2298, 0
        $region48: #{tpu_custom_call.1} parent=31 // pred_fallthru
          _
      $region32: #{tpu_custom_call.1} parent=5 // pred_fallthru
        _
      %p2319 = scmp.le.s32.totalorder 2, %s18
      // Predicated region
      $region49: #{tpu_custom_call.1} parent=5 // pred_check
        %p2320 = pneg %p2319
      $region50: #{tpu_custom_call.1} parent=5 // pred_check_branch
        %2322 = sbr.rel (%p2320) target = $region52
      $region51: #{tpu_custom_call.1} parent=5 // pred_region
        %s2323 = ssub.s32 %s18, 2
        // Predicated region
        $region53: #{tpu_custom_call.1} parent=51 // pred_check
          %p2324 = pneg %p167
        $region54: #{tpu_custom_call.1} parent=51 // pred_check_branch
          %2326 = sbr.rel (%p2324) target = $region56
        $region55: #{tpu_custom_call.1} parent=51 // pred_region
          %s2327 = sand.u32 %s152, 1
          %s2328 = scalar_lea.sflag [#allocation5], %s2327
          %s2329 = sand.u32 %s152, 1
          %s2330 = smul.addr %s2329, 512
          %s2331 = scalar_lea.vmem [#allocation8], %s2330
          %2332 = dma.done %s2328, 8192
        $region56: #{tpu_custom_call.1} parent=51 // pred_fallthru
          _
      $region52: #{tpu_custom_call.1} parent=5 // pred_fallthru
        _
    $region6: #{tpu_custom_call.1} parent=1 // loop_footer
      %s22 = sadd.s32 1, %s18
    $region7: #{tpu_custom_call.1} parent=1 // loop_footer_branch
      %17 = sbr.rel target = $region3
    $region8: #{tpu_custom_call.1} parent=1 // loop_exit
      _
    %2333 = vsyncpa [#allocation4], 1
    %s2334 = scalar_lea.sflag [#allocation4], 1
    %2335 = vsyncpa %s2334, 1
    %2336 = vsyncpa [#allocation7], 1
    %s2337 = scalar_lea.sflag [#allocation7], 1
    %2338 = vsyncpa %s2337, 1
    %2339 = vsyncpa [#allocation5], 1
    %s2340 = scalar_lea.sflag [#allocation5], 1
    %2341 = vsyncpa %s2340, 1

</llo_original>
